<compile_context>
chip_gen: v7x
topology: tpu7x:2x2x1
jax: 0.10.0
libtpu: 0.0.40
codegen_flags: <defaults>
</compile_context>

<pallas_src>
import functools

import jax
import jax.numpy as jnp
from jax.experimental import pallas as pl
from jax.experimental.pallas import tpu as pltpu

EPS = 1e-5
LANE = 128       # pad Cout to a multiple of this (lane-dense output)
GRID_PAR = 2     # leading "parallel" axis of the GEMM+stats grid (one slice per v7x TC)


def _select_tiling():
    """Per-chip tile sizing: v5e/v6e have 128 MiB VMEM per core, v7x only 64 MiB."""
    vmem = 64 * 1024 * 1024
    try:
        vmem = getattr(pltpu.get_tpu_info(), "vmem_capacity_bytes", vmem)
    except Exception:
        pass
    if vmem >= 96 * 1024 * 1024:            # v5e / v6e (128 MiB per TensorCore)
        return 1024, 96 * 1024 * 1024
    return 512, 48 * 1024 * 1024            # v7x (64 MiB per TC, leave headroom)


MAX_TILE_M, VMEM_LIMIT = _select_tiling()


# --------------------------------------------------------------------------------------
# Pallas kernels
# --------------------------------------------------------------------------------------

def _gemm_stats_kernel(p_ref, w_ref, y_ref, sum_ref, sq_ref):
    """Conv-as-GEMM tile (bf16 in, f32 acc) + per-channel sum / sum-of-squares.

    Grid is (GRID_PAR, inner): the leading axis is 'parallel' (its own stats slice per
    TensorCore on v7x), the inner axis is 'arbitrary' and carries the running sums.
    """
    @pl.when(pl.program_id(1) == 0)
    def _():
        sum_ref[...] = jnp.zeros_like(sum_ref)
        sq_ref[...] = jnp.zeros_like(sq_ref)

    y = jnp.dot(p_ref[...], w_ref[...], preferred_element_type=jnp.float32)
    y_ref[...] = y.astype(y_ref.dtype)                       # bf16 HBM intermediate
    # Stats accumulate in f32 from the f32 MXU result (independent of bf16 y store).
    # NOTE: var = E[y^2] - mean^2 is cancellation-prone for large-mean data; fine here.
    sum_ref[...] += jnp.sum(y, axis=0, keepdims=True)[None]
    sq_ref[...] += jnp.sum(y * y, axis=0, keepdims=True)[None]


def _bn_affine(sum_ref, sq_ref, gamma, beta, inv_count):
    """Reduce the per-TC partial stats and produce the BN scale/shift rows (f32)."""
    mean = jnp.sum(sum_ref[...], axis=0) * inv_count           # (1, Cp)
    var = jnp.sum(sq_ref[...], axis=0) * inv_count - mean * mean   # biased variance
    scale = jax.lax.rsqrt(var + EPS) * gamma
    shift = beta - mean * scale
    return scale, shift


def _bn_relu_kernel(y_ref, sum_ref, sq_ref, gb_ref, o_ref, *, inv_count):
    """Train-mode BN (from accumulated stats) + ReLU on one M tile."""
    gb = gb_ref[...]                                           # (2, Cp): [gamma, beta]
    scale, shift = _bn_affine(sum_ref, sq_ref, gb[0:1, :], gb[1:2, :], inv_count)
    y = y_ref[...].astype(jnp.float32)
    o_ref[...] = jnp.maximum(y * scale + shift, 0.0).astype(o_ref.dtype)


def _bn_add_identity_relu_kernel(y_ref, sum_ref, sq_ref, gb_ref, xs_ref, o_ref, *,
                                 inv_count):
    """BN + exact f32 identity-shortcut add + ReLU (no MXU pass for the shortcut)."""
    gb = gb_ref[...]
    scale, shift = _bn_affine(sum_ref, sq_ref, gb[0:1, :], gb[1:2, :], inv_count)
    y = y_ref[...].astype(jnp.float32)
    o_ref[...] = jnp.maximum(y * scale + shift + xs_ref[...], 0.0).astype(o_ref.dtype)


def _bn_add_conv1x1_relu_kernel(y_ref, sum_ref, sq_ref, gbb_ref, xs_ref, w3_ref, o_ref,
                                *, inv_count):
    """BN + fused bf16 1x1-shortcut GEMM + residual add + ReLU on one M tile."""
    gbb = gbb_ref[...]                                         # (3, Cp): [gamma, beta, b3]
    scale, shift = _bn_affine(sum_ref, sq_ref, gbb[0:1, :], gbb[1:2, :], inv_count)
    y = y_ref[...].astype(jnp.float32)
    sc = jnp.dot(xs_ref[...], w3_ref[...], preferred_element_type=jnp.float32)
    o_ref[...] = jnp.maximum(y * scale + shift + sc + gbb[2:3, :], 0.0).astype(o_ref.dtype)


# --------------------------------------------------------------------------------------
# pallas_call wrappers
# --------------------------------------------------------------------------------------

def _conv_gemm_stats(patches, w_gemm, tile_m, grid_inner):
    mp, k = patches.shape
    cp = w_gemm.shape[1]
    return pl.pallas_call(
        _gemm_stats_kernel,
        grid=(GRID_PAR, grid_inner),
        in_specs=[
            pl.BlockSpec((tile_m, k), lambda c, i: (c * grid_inner + i, 0)),  # patch rows
            pl.BlockSpec((k, cp), lambda c, i: (0, 0)),                       # weights
        ],
        out_specs=[
            pl.BlockSpec((tile_m, cp), lambda c, i: (c * grid_inner + i, 0)),  # conv out
            pl.BlockSpec((1, 1, cp), lambda c, i: (c, 0, 0)),   # per-TC running sum
            pl.BlockSpec((1, 1, cp), lambda c, i: (c, 0, 0)),   # per-TC running sumsq
        ],
        out_shape=[
            jax.ShapeDtypeStruct((mp, cp), jnp.bfloat16),       # bf16 HBM intermediate
            jax.ShapeDtypeStruct((GRID_PAR, 1, cp), jnp.float32),
            jax.ShapeDtypeStruct((GRID_PAR, 1, cp), jnp.float32),
        ],
        compiler_params=pltpu.CompilerParams(
            dimension_semantics=("parallel", "arbitrary"),      # v7x: split M across TCs
            vmem_limit_bytes=VMEM_LIMIT),
    )(patches, w_gemm)


def _bn_scale_relu(y_raw, ssum, ssq, gb, tile_m, grid_m, inv_count, out_dtype):
    mp, cp = y_raw.shape
    kern = functools.partial(_bn_relu_kernel, inv_count=inv_count)
    return pl.pallas_call(
        kern,
        grid=(grid_m,),
        in_specs=[
            pl.BlockSpec((tile_m, cp), lambda i: (i, 0)),
            pl.BlockSpec((GRID_PAR, 1, cp), lambda i: (0, 0, 0)),
            pl.BlockSpec((GRID_PAR, 1, cp), lambda i: (0, 0, 0)),
            pl.BlockSpec((2, cp), lambda i: (0, 0)),
        ],
        out_specs=pl.BlockSpec((tile_m, cp), lambda i: (i, 0)),
        out_shape=jax.ShapeDtypeStruct((mp, cp), out_dtype),
        compiler_params=pltpu.CompilerParams(
            dimension_semantics=("parallel",),
            vmem_limit_bytes=VMEM_LIMIT),
    )(y_raw, ssum, ssq, gb)


def _bn_add_identity_relu(y_raw, ssum, ssq, gb, xs, tile_m, grid_m, inv_count):
    mp, cp = y_raw.shape
    kern = functools.partial(_bn_add_identity_relu_kernel, inv_count=inv_count)
    return pl.pallas_call(
        kern,
        grid=(grid_m,),
        in_specs=[
            pl.BlockSpec((tile_m, cp), lambda i: (i, 0)),
            pl.BlockSpec((GRID_PAR, 1, cp), lambda i: (0, 0, 0)),
            pl.BlockSpec((GRID_PAR, 1, cp), lambda i: (0, 0, 0)),
            pl.BlockSpec((2, cp), lambda i: (0, 0)),
            pl.BlockSpec((tile_m, cp), lambda i: (i, 0)),       # f32 identity shortcut
        ],
        out_specs=pl.BlockSpec((tile_m, cp), lambda i: (i, 0)),
        out_shape=jax.ShapeDtypeStruct((mp, cp), jnp.float32),
        compiler_params=pltpu.CompilerParams(
            dimension_semantics=("parallel",),
            vmem_limit_bytes=VMEM_LIMIT),
    )(y_raw, ssum, ssq, gb, xs)


def _bn_add_conv1x1_relu(y_raw, ssum, ssq, gbb, xs, w3, tile_m, grid_m, inv_count):
    mp, cp = y_raw.shape
    cin = xs.shape[1]
    kern = functools.partial(_bn_add_conv1x1_relu_kernel, inv_count=inv_count)
    return pl.pallas_call(
        kern,
        grid=(grid_m,),
        in_specs=[
            pl.BlockSpec((tile_m, cp), lambda i: (i, 0)),
            pl.BlockSpec((GRID_PAR, 1, cp), lambda i: (0, 0, 0)),
            pl.BlockSpec((GRID_PAR, 1, cp), lambda i: (0, 0, 0)),
            pl.BlockSpec((3, cp), lambda i: (0, 0)),
            pl.BlockSpec((tile_m, cin), lambda i: (i, 0)),      # strided input (bf16)
            pl.BlockSpec((cin, cp), lambda i: (0, 0)),          # 1x1 weight (bf16)
        ],
        out_specs=pl.BlockSpec((tile_m, cp), lambda i: (i, 0)),
        out_shape=jax.ShapeDtypeStruct((mp, cp), jnp.float32),
        compiler_params=pltpu.CompilerParams(
            dimension_semantics=("parallel",),
            vmem_limit_bytes=VMEM_LIMIT),
    )(y_raw, ssum, ssq, gbb, xs, w3)


# --------------------------------------------------------------------------------------
# Glue: im2col, layout transposes, padding
# --------------------------------------------------------------------------------------

def _cdiv(a, b):
    return -(-a // b)


def _round_up(x, m):
    return (x + m - 1) // m * m


def _pad2(a, rows, cols):
    r, c = a.shape
    pr = (rows - r) if rows is not None else 0
    pc = (cols - c) if cols is not None else 0
    if pr == 0 and pc == 0:
        return a
    return jnp.pad(a, ((0, pr), (0, pc)))


def _padc(v, cp):
    return jnp.pad(v.astype(jnp.float32), (0, cp - v.shape[0]))


def _im2col_3x3(x_nhwc, stride):
    """x_nhwc (N,H,W,C), pad=1, kernel 3x3 -> patches (N*Ho*Wo, 9*C), dtype-preserving."""
    n, h, w, c = x_nhwc.shape
    ho = (h + 2 - 3) // stride + 1
    wo = (w + 2 - 3) // stride + 1
    xp = jnp.pad(x_nhwc, ((0, 0), (1, 1), (1, 1), (0, 0)))
    cols = []
    for kh in range(3):
        for kw in range(3):
            cols.append(xp[:, kh:kh + (ho - 1) * stride + 1:stride,
                              kw:kw + (wo - 1) * stride + 1:stride, :])
    patches = jnp.stack(cols, axis=3)                     # (N, Ho, Wo, 9, C)
    return patches.reshape(n * ho * wo, 9 * c), (n, ho, wo)


def _w3x3_to_gemm(w_oihw):
    """(Cout, Cin, 3, 3) -> (9*Cin, Cout), matching (kh, kw, Cin) patch ordering."""
    cout, cin, _, _ = w_oihw.shape
    return jnp.transpose(w_oihw, (2, 3, 1, 0)).reshape(9 * cin, cout)


@functools.partial(jax.jit, static_argnames=("stride", "use_1x1conv"))
def residual_forward(x_nchw, params, stride=1, use_1x1conv=False):
    x = jnp.transpose(x_nchw, (0, 2, 3, 1)).astype(jnp.float32)     # NCHW -> NHWC
    n, h, w, cin = x.shape
    cout = params["w1"].shape[0]
    cp = _round_up(cout, LANE)                                      # lane-dense GEMM N

    # ---- Conv1 (3x3, stride) as bf16 GEMM + BN stats ----------------------------------
    # im2col patches (9x-amplified) are built and padded directly in bf16.
    p1, (_, ho, wo) = _im2col_3x3(x.astype(jnp.bfloat16), stride)
    m = n * ho * wo
    tile_m = min(MAX_TILE_M, _round_up(_cdiv(m, GRID_PAR), 16))
    mp = _round_up(m, GRID_PAR * tile_m)
    grid_inner = mp // (GRID_PAR * tile_m)
    grid_m = mp // tile_m
    # Zero-padded patch rows contribute exactly 0 to the accumulated sums, so dividing
    # by the UNPADDED m yields the true batch statistics. Padding must stay zero-filled.
    inv_count = 1.0 / float(m)

    p1 = _pad2(p1, mp, None)                                        # bf16 end-to-end
    w1 = _pad2(_w3x3_to_gemm(params["w1"]), None, cp).astype(jnp.bfloat16)
    gb1 = jnp.stack([_padc(params["gamma1"], cp), _padc(params["beta1"], cp)])
    # NOTE: conv biases b1/b2 are dropped — train-mode BN subtracts the batch mean,
    # which cancels any per-channel bias exactly.

    y1_raw, s1, q1 = _conv_gemm_stats(p1, w1, tile_m, grid_inner)
    y1p = _bn_scale_relu(y1_raw, s1, q1, gb1, tile_m, grid_m, inv_count, jnp.bfloat16)

    # ---- Conv2 (3x3, stride 1) as bf16 GEMM + BN stats --------------------------------
    y1 = y1p[:m, :cout].reshape(n, ho, wo, cout)                    # bf16
    p2, _ = _im2col_3x3(y1, 1)                                      # (m, 9*cout) bf16
    p2 = _pad2(p2, mp, None)
    w2 = _pad2(_w3x3_to_gemm(params["w2"]), None, cp).astype(jnp.bfloat16)
    gb2 = jnp.stack([_padc(params["gamma2"], cp), _padc(params["beta2"], cp)])

    y2_raw, s2, q2 = _conv_gemm_stats(p2, w2, tile_m, grid_inner)

    # ---- Shortcut + BN2 + residual add + ReLU (fused epilogue) ------------------------
    if use_1x1conv:
        xs = _pad2(x[:, ::stride, ::stride, :].reshape(m, cin).astype(jnp.bfloat16),
                   mp, None)
        w3 = _pad2(jnp.transpose(params["w3"][:, :, 0, 0], (1, 0)),
                   None, cp).astype(jnp.bfloat16)
        gbb2 = jnp.concatenate([gb2, _padc(params["b3"], cp)[None]], axis=0)
        outp = _bn_add_conv1x1_relu(y2_raw, s2, q2, gbb2, xs, w3,
                                    tile_m, grid_m, inv_count)
    else:
        assert stride == 1 and cin == cout, (
            "use_1x1conv=False requires stride==1 and input_channels==output_channels")
        # Identity shortcut: exact f32 pass-through, plain add in-kernel (no MXU, no w3).
        xs = _pad2(x.reshape(m, cin), mp, cp)
        outp = _bn_add_identity_relu(y2_raw, s2, q2, gb2, xs, tile_m, grid_m, inv_count)

    out = outp[:m, :cout].reshape(n, ho, wo, cout)
    return jnp.transpose(out, (0, 3, 1, 2))                         # NHWC -> NCHW


# --------------------------------------------------------------------------------------
# Pure-JAX reference (NCHW, matches PyTorch train-mode forward, including conv biases)
# --------------------------------------------------------------------------------------

def _ref_forward(x, params, stride, use_1x1conv):
    def conv(x, w, b, s, pad):
        y = jax.lax.conv_general_dilated(
            x, w, (s, s), [(pad, pad), (pad, pad)],
            dimension_numbers=("NCHW", "OIHW", "NCHW"))
        return y + b[None, :, None, None]

    def bn(y, g, bt):
        mu = y.mean(axis=(0, 2, 3), keepdims=True)
        v = jnp.square(y - mu).mean(axis=(0, 2, 3), keepdims=True)
        return (y - mu) * jax.lax.rsqrt(v + EPS) * g[None, :, None, None] + bt[None, :, None, None]

    Y = jax.nn.relu(bn(conv(x, params["w1"], params["b1"], stride, 1),
                       params["gamma1"], params["beta1"]))
    Y = bn(conv(Y, params["w2"], params["b2"], 1, 1), params["gamma2"], params["beta2"])
    if use_1x1conv:
        x = conv(x, params["w3"], params["b3"], stride, 0)
    return jax.nn.relu(Y + x)


# --------------------------------------------------------------------------------------
# Main
# --------------------------------------------------------------------------------------

def _init_params(key, cin, cout):
    ks = jax.random.split(key, 6)
    scale1 = 1.0 / jnp.sqrt(cin * 9.0)
    scale2 = 1.0 / jnp.sqrt(cout * 9.0)
    scale3 = 1.0 / jnp.sqrt(cin * 1.0)
    return {
        "w1": jax.random.uniform(ks[0], (cout, cin, 3, 3), jnp.float32, -scale1, scale1),
        "b1": jax.random.uniform(ks[1], (cout,), jnp.float32, -scale1, scale1),
        "w2": jax.random.uniform(ks[2], (cout, cout, 3, 3), jnp.float32, -scale2, scale2),
        "b2": jax.random.uniform(ks[3], (cout,), jnp.float32, -scale2, scale2),
        "w3": jax.random.uniform(ks[4], (cout, cin, 1, 1), jnp.float32, -scale3, scale3),
        "b3": jax.random.uniform(ks[5], (cout,), jnp.float32, -scale3, scale3),
        # PyTorch BatchNorm2d default init: gamma=1, beta=0
        "gamma1": jnp.ones((cout,), jnp.float32),
        "beta1": jnp.zeros((cout,), jnp.float32),
        "gamma2": jnp.ones((cout,), jnp.float32),
        "beta2": jnp.zeros((cout,), jnp.float32),
    }


if __name__ == "__main__":
    key = jax.random.PRNGKey(0)
    kx, kp, kx2, kp2 = jax.random.split(key, 4)

    # Case 1: downsampling block with 1x1-conv shortcut.
    N, CIN, COUT, H, W = 2, 4, 8, 16, 16
    x = jax.random.normal(kx, (N, CIN, H, W), jnp.float32)              # NCHW like PyTorch
    params = _init_params(kp, CIN, COUT)
    out = jax.block_until_ready(residual_forward(x, params, stride=2, use_1x1conv=True))
    ref = _ref_forward(x, params, 2, True)
    assert out.shape == ref.shape == (N, COUT, H // 2, W // 2)
    assert jnp.allclose(out, ref, atol=5e-2, rtol=5e-2), (
        f"mismatch vs reference: max|err|={float(jnp.max(jnp.abs(out - ref))):.4f}")

    # Case 2: identity-shortcut block (Cin == Cout, stride 1, no 1x1 conv).
    x2 = jax.random.normal(kx2, (N, COUT, H, W), jnp.float32)
    params2 = _init_params(kp2, COUT, COUT)
    out2 = jax.block_until_ready(residual_forward(x2, params2, stride=1, use_1x1conv=False))
    ref2 = _ref_forward(x2, params2, 1, False)
    assert out2.shape == ref2.shape == (N, COUT, H, W)
    assert jnp.allclose(out2, ref2, atol=5e-2, rtol=5e-2), (
        f"mismatch vs reference: max|err|={float(jnp.max(jnp.abs(out2 - ref2))):.4f}")

    print("KERNEL_OK")
</pallas_src>

<mosaic_0001>
module attributes {stable_mosaic.version = 11 : i64} {
  func.func @_gemm_stats_kernel(%arg0: i32, %arg1: i32, %arg2: memref<64x36xbf16, #tpu.memory_space<vmem>>, %arg3: memref<36x128xbf16, #tpu.memory_space<vmem>>, %arg4: memref<64x128xbf16, #tpu.memory_space<vmem>>, %arg5: memref<1x1x128xf32, #tpu.memory_space<vmem>>, %arg6: memref<1x1x128xf32, #tpu.memory_space<vmem>>) attributes {dimension_semantics = [#tpu.dimension_semantics<parallel>, #tpu.dimension_semantics<arbitrary>], iteration_bounds = array<i64: 2, 1>, scalar_prefetch = 0 : i64, scratch_operands = 0 : i64, tpu.core_type = #tpu.core_type<tc>, window_params = [{transform_indices = @transform_0, window_bounds = array<i64: 64, 36>}, {pipeline_mode = #tpu.pipeline_mode<synchronous>, transform_indices = @transform_1, window_bounds = array<i64: 36, 128>}, {transform_indices = @transform_2, window_bounds = array<i64: 64, 128>}, {transform_indices = @transform_3, window_bounds = array<i64: 1, 1, 128>}, {transform_indices = @transform_4, window_bounds = array<i64: 1, 1, 128>}]} {
    %c0_i32 = arith.constant 0 : i32
    %0 = arith.cmpi eq, %arg1, %c0_i32 : i32
    %1 = arith.extui %0 : i1 to i32
    %c0_i32_0 = arith.constant 0 : i32
    %2 = arith.cmpi ne, %1, %c0_i32_0 : i32
    scf.if %2 {
      %cst_20 = arith.constant 0.000000e+00 : f32
      %21 = vector.broadcast %cst_20 : f32 to vector<1x1x128xf32>
      %c0_21 = arith.constant 0 : index
      %c0_22 = arith.constant 0 : index
      %c0_23 = arith.constant 0 : index
      %22 = vector.load %arg5[%c0_21, %c0_22, %c0_23] : memref<1x1x128xf32, #tpu.memory_space<vmem>>, vector<1x1x128xf32>
      tpu.vector_store %arg5[%c0_21, %c0_22, %c0_23], %21 {strides = array<i32>} : memref<1x1x128xf32, #tpu.memory_space<vmem>>, vector<1x1x128xf32>,
      %cst_24 = arith.constant 0.000000e+00 : f32
      %23 = vector.broadcast %cst_24 : f32 to vector<1x1x128xf32>
      %c0_25 = arith.constant 0 : index
      %c0_26 = arith.constant 0 : index
      %c0_27 = arith.constant 0 : index
      %24 = vector.load %arg6[%c0_25, %c0_26, %c0_27] : memref<1x1x128xf32, #tpu.memory_space<vmem>>, vector<1x1x128xf32>
      tpu.vector_store %arg6[%c0_25, %c0_26, %c0_27], %23 {strides = array<i32>} : memref<1x1x128xf32, #tpu.memory_space<vmem>>, vector<1x1x128xf32>,
    } else {
    }
    %c0 = arith.constant 0 : index
    %c0_1 = arith.constant 0 : index
    %3 = vector.load %arg2[%c0, %c0_1] : memref<64x36xbf16, #tpu.memory_space<vmem>>, vector<64x36xbf16>
    %c0_2 = arith.constant 0 : index
    %c0_3 = arith.constant 0 : index
    %4 = vector.load %arg3[%c0_2, %c0_3] : memref<36x128xbf16, #tpu.memory_space<vmem>>, vector<36x128xbf16>
    %cst = arith.constant dense<0.000000e+00> : vector<64x128xf32>
    %5 = tpu.matmul %3, %4, %cst {dimension_numbers = #tpu.dot_dimension_numbers<[1], [0], [0], [1], [0, 0, 1, 1], [], []>} : vector<64x36xbf16>, vector<36x128xbf16>, vector<64x128xf32> -> vector<64x128xf32>
    %6 = arith.truncf %5 : vector<64x128xf32> to vector<64x128xbf16>
    %c0_4 = arith.constant 0 : index
    %c0_5 = arith.constant 0 : index
    %7 = vector.load %arg4[%c0_4, %c0_5] : memref<64x128xbf16, #tpu.memory_space<vmem>>, vector<64x128xbf16>
    tpu.vector_store %arg4[%c0_4, %c0_5], %6 {strides = array<i32>} : memref<64x128xbf16, #tpu.memory_space<vmem>>, vector<64x128xbf16>,
    %c0_6 = arith.constant 0 : index
    %c0_7 = arith.constant 0 : index
    %c0_8 = arith.constant 0 : index
    %8 = vector.load %arg5[%c0_6, %c0_7, %c0_8] : memref<1x1x128xf32, #tpu.memory_space<vmem>>, vector<1x1x128xf32>
    %cst_9 = arith.constant dense<0.000000e+00> : vector<128xf32>
    %9 = vector.multi_reduction <add>, %5, %cst_9 [0] : vector<64x128xf32> to vector<128xf32>
    %10 = vector.shape_cast %9 : vector<128xf32> to vector<1x128xf32>
    %11 = vector.shape_cast %10 : vector<1x128xf32> to vector<1x1x128xf32>
    %12 = arith.addf %8, %11 : vector<1x1x128xf32>
    %c0_10 = arith.constant 0 : index
    %c0_11 = arith.constant 0 : index
    %c0_12 = arith.constant 0 : index
    %13 = vector.load %arg5[%c0_10, %c0_11, %c0_12] : memref<1x1x128xf32, #tpu.memory_space<vmem>>, vector<1x1x128xf32>
    tpu.vector_store %arg5[%c0_10, %c0_11, %c0_12], %12 {strides = array<i32>} : memref<1x1x128xf32, #tpu.memory_space<vmem>>, vector<1x1x128xf32>,
    %c0_13 = arith.constant 0 : index
    %c0_14 = arith.constant 0 : index
    %c0_15 = arith.constant 0 : index
    %14 = vector.load %arg6[%c0_13, %c0_14, %c0_15] : memref<1x1x128xf32, #tpu.memory_space<vmem>>, vector<1x1x128xf32>
    %15 = arith.mulf %5, %5 : vector<64x128xf32>
    %cst_16 = arith.constant dense<0.000000e+00> : vector<128xf32>
    %16 = vector.multi_reduction <add>, %15, %cst_16 [0] : vector<64x128xf32> to vector<128xf32>
    %17 = vector.shape_cast %16 : vector<128xf32> to vector<1x128xf32>
    %18 = vector.shape_cast %17 : vector<1x128xf32> to vector<1x1x128xf32>
    %19 = arith.addf %14, %18 : vector<1x1x128xf32>
    %c0_17 = arith.constant 0 : index
    %c0_18 = arith.constant 0 : index
    %c0_19 = arith.constant 0 : index
    %20 = vector.load %arg6[%c0_17, %c0_18, %c0_19] : memref<1x1x128xf32, #tpu.memory_space<vmem>>, vector<1x1x128xf32>
    tpu.vector_store %arg6[%c0_17, %c0_18, %c0_19], %19 {strides = array<i32>} : memref<1x1x128xf32, #tpu.memory_space<vmem>>, vector<1x1x128xf32>,
    return
  }
  func.func @transform_0(%arg0: i32, %arg1: i32) -> (i32, i32) {
    %c1_i32 = arith.constant 1 : i32
    %0 = arith.muli %arg0, %c1_i32 : i32
    %1 = arith.addi %0, %arg1 : i32
    %c0_i32 = arith.constant 0 : i32
    %c0_i32_0 = arith.constant 0 : i32
    return %1, %c0_i32 : i32, i32
  }
  func.func @transform_1(%arg0: i32, %arg1: i32) -> (i32, i32) {
    %c0_i32 = arith.constant 0 : i32
    %c0_i32_0 = arith.constant 0 : i32
    %c0_i32_1 = arith.constant 0 : i32
    return %c0_i32, %c0_i32_0 : i32, i32
  }
  func.func @transform_2(%arg0: i32, %arg1: i32) -> (i32, i32) {
    %c1_i32 = arith.constant 1 : i32
    %0 = arith.muli %arg0, %c1_i32 : i32
    %1 = arith.addi %0, %arg1 : i32
    %c0_i32 = arith.constant 0 : i32
    %c0_i32_0 = arith.constant 0 : i32
    return %1, %c0_i32 : i32, i32
  }
  func.func @transform_3(%arg0: i32, %arg1: i32) -> (i32, i32, i32) {
    %c0_i32 = arith.constant 0 : i32
    %c0_i32_0 = arith.constant 0 : i32
    %c0_i32_1 = arith.constant 0 : i32
    return %arg0, %c0_i32, %c0_i32_0 : i32, i32, i32
  }
  func.func @transform_4(%arg0: i32, %arg1: i32) -> (i32, i32, i32) {
    %c0_i32 = arith.constant 0 : i32
    %c0_i32_0 = arith.constant 0 : i32
    %c0_i32_1 = arith.constant 0 : i32
    return %arg0, %c0_i32, %c0_i32_0 : i32, i32, i32
  }
}

module attributes {stable_mosaic.version = 11 : i64} {
  func.func @_bn_relu_kernel(%arg0: i32, %arg1: memref<64x128xbf16, #tpu.memory_space<vmem>>, %arg2: memref<2x1x128xf32, #tpu.memory_space<vmem>>, %arg3: memref<2x1x128xf32, #tpu.memory_space<vmem>>, %arg4: memref<2x128xf32, #tpu.memory_space<vmem>>, %arg5: memref<64x128xbf16, #tpu.memory_space<vmem>>) attributes {dimension_semantics = [#tpu.dimension_semantics<parallel>], iteration_bounds = array<i64: 2>, scalar_prefetch = 0 : i64, scratch_operands = 0 : i64, tpu.core_type = #tpu.core_type<tc>, window_params = [{transform_indices = @transform_0, window_bounds = array<i64: 64, 128>}, {pipeline_mode = #tpu.pipeline_mode<synchronous>, transform_indices = @transform_1, window_bounds = array<i64: 2, 1, 128>}, {pipeline_mode = #tpu.pipeline_mode<synchronous>, transform_indices = @transform_2, window_bounds = array<i64: 2, 1, 128>}, {pipeline_mode = #tpu.pipeline_mode<synchronous>, transform_indices = @transform_3, window_bounds = array<i64: 2, 128>}, {transform_indices = @transform_4, window_bounds = array<i64: 64, 128>}]} {
    %c0 = arith.constant 0 : index
    %c0_0 = arith.constant 0 : index
    %0 = vector.load %arg4[%c0, %c0_0] : memref<2x128xf32, #tpu.memory_space<vmem>>, vector<2x128xf32>
    %1 = vector.extract_strided_slice %0 {offsets = [0, 0], sizes = [1, 128], strides = [1, 1]} : vector<2x128xf32> to vector<1x128xf32>
    %2 = vector.extract_strided_slice %0 {offsets = [1, 0], sizes = [1, 128], strides = [1, 1]} : vector<2x128xf32> to vector<1x128xf32>
    %c0_1 = arith.constant 0 : index
    %c0_2 = arith.constant 0 : index
    %c0_3 = arith.constant 0 : index
    %3 = vector.load %arg2[%c0_1, %c0_2, %c0_3] : memref<2x1x128xf32, #tpu.memory_space<vmem>>, vector<2x1x128xf32>
    %cst = arith.constant dense<0.000000e+00> : vector<1x128xf32>
    %4 = vector.multi_reduction <add>, %3, %cst [0] : vector<2x1x128xf32> to vector<1x128xf32>
    %cst_4 = arith.constant 7.812500e-03 : f32
    %5 = vector.broadcast %cst_4 : f32 to vector<1x128xf32>
    %6 = arith.mulf %4, %5 : vector<1x128xf32>
    %c0_5 = arith.constant 0 : index
    %c0_6 = arith.constant 0 : index
    %c0_7 = arith.constant 0 : index
    %7 = vector.load %arg3[%c0_5, %c0_6, %c0_7] : memref<2x1x128xf32, #tpu.memory_space<vmem>>, vector<2x1x128xf32>
    %cst_8 = arith.constant dense<0.000000e+00> : vector<1x128xf32>
    %8 = vector.multi_reduction <add>, %7, %cst_8 [0] : vector<2x1x128xf32> to vector<1x128xf32>
    %cst_9 = arith.constant 7.812500e-03 : f32
    %9 = vector.broadcast %cst_9 : f32 to vector<1x128xf32>
    %10 = arith.mulf %8, %9 : vector<1x128xf32>
    %11 = arith.mulf %6, %6 : vector<1x128xf32>
    %12 = arith.subf %10, %11 : vector<1x128xf32>
    %cst_10 = arith.constant 9.99999974E-6 : f32
    %13 = vector.broadcast %cst_10 : f32 to vector<1x128xf32>
    %14 = arith.addf %12, %13 : vector<1x128xf32>
    %15 = math.rsqrt %14 : vector<1x128xf32>
    %16 = arith.mulf %15, %1 : vector<1x128xf32>
    %17 = arith.mulf %6, %16 : vector<1x128xf32>
    %18 = arith.subf %2, %17 : vector<1x128xf32>
    %c0_11 = arith.constant 0 : index
    %c0_12 = arith.constant 0 : index
    %19 = vector.load %arg1[%c0_11, %c0_12] : memref<64x128xbf16, #tpu.memory_space<vmem>>, vector<64x128xbf16>
    %20 = arith.extf %19 : vector<64x128xbf16> to vector<64x128xf32>
    %21 = vector.broadcast %16 : vector<1x128xf32> to vector<64x128xf32>
    %22 = arith.mulf %20, %21 : vector<64x128xf32>
    %23 = vector.broadcast %18 : vector<1x128xf32> to vector<64x128xf32>
    %24 = arith.addf %22, %23 : vector<64x128xf32>
    %cst_13 = arith.constant 0.000000e+00 : f32
    %25 = vector.broadcast %cst_13 : f32 to vector<64x128xf32>
    %26 = arith.maximumf %24, %25 : vector<64x128xf32>
    %27 = arith.truncf %26 : vector<64x128xf32> to vector<64x128xbf16>
    %c0_14 = arith.constant 0 : index
    %c0_15 = arith.constant 0 : index
    %28 = vector.load %arg5[%c0_14, %c0_15] : memref<64x128xbf16, #tpu.memory_space<vmem>>, vector<64x128xbf16>
    tpu.vector_store %arg5[%c0_14, %c0_15], %27 {strides = array<i32>} : memref<64x128xbf16, #tpu.memory_space<vmem>>, vector<64x128xbf16>,
    return
  }
  func.func @transform_0(%arg0: i32) -> (i32, i32) {
    %c0_i32 = arith.constant 0 : i32
    %c0_i32_0 = arith.constant 0 : i32
    return %arg0, %c0_i32 : i32, i32
  }
  func.func @transform_1(%arg0: i32) -> (i32, i32, i32) {
    %c0_i32 = arith.constant 0 : i32
    %c0_i32_0 = arith.constant 0 : i32
    %c0_i32_1 = arith.constant 0 : i32
    %c0_i32_2 = arith.constant 0 : i32
    return %c0_i32, %c0_i32_0, %c0_i32_1 : i32, i32, i32
  }
  func.func @transform_2(%arg0: i32) -> (i32, i32, i32) {
    %c0_i32 = arith.constant 0 : i32
    %c0_i32_0 = arith.constant 0 : i32
    %c0_i32_1 = arith.constant 0 : i32
    %c0_i32_2 = arith.constant 0 : i32
    return %c0_i32, %c0_i32_0, %c0_i32_1 : i32, i32, i32
  }
  func.func @transform_3(%arg0: i32) -> (i32, i32) {
    %c0_i32 = arith.constant 0 : i32
    %c0_i32_0 = arith.constant 0 : i32
    %c0_i32_1 = arith.constant 0 : i32
    return %c0_i32, %c0_i32_0 : i32, i32
  }
  func.func @transform_4(%arg0: i32) -> (i32, i32) {
    %c0_i32 = arith.constant 0 : i32
    %c0_i32_0 = arith.constant 0 : i32
    return %arg0, %c0_i32 : i32, i32
  }
}

module attributes {stable_mosaic.version = 11 : i64} {
  func.func @_gemm_stats_kernel(%arg0: i32, %arg1: i32, %arg2: memref<64x72xbf16, #tpu.memory_space<vmem>>, %arg3: memref<72x128xbf16, #tpu.memory_space<vmem>>, %arg4: memref<64x128xbf16, #tpu.memory_space<vmem>>, %arg5: memref<1x1x128xf32, #tpu.memory_space<vmem>>, %arg6: memref<1x1x128xf32, #tpu.memory_space<vmem>>) attributes {dimension_semantics = [#tpu.dimension_semantics<parallel>, #tpu.dimension_semantics<arbitrary>], iteration_bounds = array<i64: 2, 1>, scalar_prefetch = 0 : i64, scratch_operands = 0 : i64, tpu.core_type = #tpu.core_type<tc>, window_params = [{transform_indices = @transform_0, window_bounds = array<i64: 64, 72>}, {pipeline_mode = #tpu.pipeline_mode<synchronous>, transform_indices = @transform_1, window_bounds = array<i64: 72, 128>}, {transform_indices = @transform_2, window_bounds = array<i64: 64, 128>}, {transform_indices = @transform_3, window_bounds = array<i64: 1, 1, 128>}, {transform_indices = @transform_4, window_bounds = array<i64: 1, 1, 128>}]} {
    %c0_i32 = arith.constant 0 : i32
    %0 = arith.cmpi eq, %arg1, %c0_i32 : i32
    %1 = arith.extui %0 : i1 to i32
    %c0_i32_0 = arith.constant 0 : i32
    %2 = arith.cmpi ne, %1, %c0_i32_0 : i32
    scf.if %2 {
      %cst_20 = arith.constant 0.000000e+00 : f32
      %21 = vector.broadcast %cst_20 : f32 to vector<1x1x128xf32>
      %c0_21 = arith.constant 0 : index
      %c0_22 = arith.constant 0 : index
      %c0_23 = arith.constant 0 : index
      %22 = vector.load %arg5[%c0_21, %c0_22, %c0_23] : memref<1x1x128xf32, #tpu.memory_space<vmem>>, vector<1x1x128xf32>
      tpu.vector_store %arg5[%c0_21, %c0_22, %c0_23], %21 {strides = array<i32>} : memref<1x1x128xf32, #tpu.memory_space<vmem>>, vector<1x1x128xf32>,
      %cst_24 = arith.constant 0.000000e+00 : f32
      %23 = vector.broadcast %cst_24 : f32 to vector<1x1x128xf32>
      %c0_25 = arith.constant 0 : index
      %c0_26 = arith.constant 0 : index
      %c0_27 = arith.constant 0 : index
      %24 = vector.load %arg6[%c0_25, %c0_26, %c0_27] : memref<1x1x128xf32, #tpu.memory_space<vmem>>, vector<1x1x128xf32>
      tpu.vector_store %arg6[%c0_25, %c0_26, %c0_27], %23 {strides = array<i32>} : memref<1x1x128xf32, #tpu.memory_space<vmem>>, vector<1x1x128xf32>,
    } else {
    }
    %c0 = arith.constant 0 : index
    %c0_1 = arith.constant 0 : index
    %3 = vector.load %arg2[%c0, %c0_1] : memref<64x72xbf16, #tpu.memory_space<vmem>>, vector<64x72xbf16>
    %c0_2 = arith.constant 0 : index
    %c0_3 = arith.constant 0 : index
    %4 = vector.load %arg3[%c0_2, %c0_3] : memref<72x128xbf16, #tpu.memory_space<vmem>>, vector<72x128xbf16>
    %cst = arith.constant dense<0.000000e+00> : vector<64x128xf32>
    %5 = tpu.matmul %3, %4, %cst {dimension_numbers = #tpu.dot_dimension_numbers<[1], [0], [0], [1], [0, 0, 1, 1], [], []>} : vector<64x72xbf16>, vector<72x128xbf16>, vector<64x128xf32> -> vector<64x128xf32>
    %6 = arith.truncf %5 : vector<64x128xf32> to vector<64x128xbf16>
    %c0_4 = arith.constant 0 : index
    %c0_5 = arith.constant 0 : index
    %7 = vector.load %arg4[%c0_4, %c0_5] : memref<64x128xbf16, #tpu.memory_space<vmem>>, vector<64x128xbf16>
    tpu.vector_store %arg4[%c0_4, %c0_5], %6 {strides = array<i32>} : memref<64x128xbf16, #tpu.memory_space<vmem>>, vector<64x128xbf16>,
    %c0_6 = arith.constant 0 : index
    %c0_7 = arith.constant 0 : index
    %c0_8 = arith.constant 0 : index
    %8 = vector.load %arg5[%c0_6, %c0_7, %c0_8] : memref<1x1x128xf32, #tpu.memory_space<vmem>>, vector<1x1x128xf32>
    %cst_9 = arith.constant dense<0.000000e+00> : vector<128xf32>
    %9 = vector.multi_reduction <add>, %5, %cst_9 [0] : vector<64x128xf32> to vector<128xf32>
    %10 = vector.shape_cast %9 : vector<128xf32> to vector<1x128xf32>
    %11 = vector.shape_cast %10 : vector<1x128xf32> to vector<1x1x128xf32>
    %12 = arith.addf %8, %11 : vector<1x1x128xf32>
    %c0_10 = arith.constant 0 : index
    %c0_11 = arith.constant 0 : index
    %c0_12 = arith.constant 0 : index
    %13 = vector.load %arg5[%c0_10, %c0_11, %c0_12] : memref<1x1x128xf32, #tpu.memory_space<vmem>>, vector<1x1x128xf32>
    tpu.vector_store %arg5[%c0_10, %c0_11, %c0_12], %12 {strides = array<i32>} : memref<1x1x128xf32, #tpu.memory_space<vmem>>, vector<1x1x128xf32>,
    %c0_13 = arith.constant 0 : index
    %c0_14 = arith.constant 0 : index
    %c0_15 = arith.constant 0 : index
    %14 = vector.load %arg6[%c0_13, %c0_14, %c0_15] : memref<1x1x128xf32, #tpu.memory_space<vmem>>, vector<1x1x128xf32>
    %15 = arith.mulf %5, %5 : vector<64x128xf32>
    %cst_16 = arith.constant dense<0.000000e+00> : vector<128xf32>
    %16 = vector.multi_reduction <add>, %15, %cst_16 [0] : vector<64x128xf32> to vector<128xf32>
    %17 = vector.shape_cast %16 : vector<128xf32> to vector<1x128xf32>
    %18 = vector.shape_cast %17 : vector<1x128xf32> to vector<1x1x128xf32>
    %19 = arith.addf %14, %18 : vector<1x1x128xf32>
    %c0_17 = arith.constant 0 : index
    %c0_18 = arith.constant 0 : index
    %c0_19 = arith.constant 0 : index
    %20 = vector.load %arg6[%c0_17, %c0_18, %c0_19] : memref<1x1x128xf32, #tpu.memory_space<vmem>>, vector<1x1x128xf32>
    tpu.vector_store %arg6[%c0_17, %c0_18, %c0_19], %19 {strides = array<i32>} : memref<1x1x128xf32, #tpu.memory_space<vmem>>, vector<1x1x128xf32>,
    return
  }
  func.func @transform_0(%arg0: i32, %arg1: i32) -> (i32, i32) {
    %c1_i32 = arith.constant 1 : i32
    %0 = arith.muli %arg0, %c1_i32 : i32
    %1 = arith.addi %0, %arg1 : i32
    %c0_i32 = arith.constant 0 : i32
    %c0_i32_0 = arith.constant 0 : i32
    return %1, %c0_i32 : i32, i32
  }
  func.func @transform_1(%arg0: i32, %arg1: i32) -> (i32, i32) {
    %c0_i32 = arith.constant 0 : i32
    %c0_i32_0 = arith.constant 0 : i32
    %c0_i32_1 = arith.constant 0 : i32
    return %c0_i32, %c0_i32_0 : i32, i32
  }
  func.func @transform_2(%arg0: i32, %arg1: i32) -> (i32, i32) {
    %c1_i32 = arith.constant 1 : i32
    %0 = arith.muli %arg0, %c1_i32 : i32
    %1 = arith.addi %0, %arg1 : i32
    %c0_i32 = arith.constant 0 : i32
    %c0_i32_0 = arith.constant 0 : i32
    return %1, %c0_i32 : i32, i32
  }
  func.func @transform_3(%arg0: i32, %arg1: i32) -> (i32, i32, i32) {
    %c0_i32 = arith.constant 0 : i32
    %c0_i32_0 = arith.constant 0 : i32
    %c0_i32_1 = arith.constant 0 : i32
    return %arg0, %c0_i32, %c0_i32_0 : i32, i32, i32
  }
  func.func @transform_4(%arg0: i32, %arg1: i32) -> (i32, i32, i32) {
    %c0_i32 = arith.constant 0 : i32
    %c0_i32_0 = arith.constant 0 : i32
    %c0_i32_1 = arith.constant 0 : i32
    return %arg0, %c0_i32, %c0_i32_0 : i32, i32, i32
  }
}

module attributes {stable_mosaic.version = 11 : i64} {
  func.func @_bn_add_conv1x1_relu_kernel(%arg0: i32, %arg1: memref<64x128xbf16, #tpu.memory_space<vmem>>, %arg2: memref<2x1x128xf32, #tpu.memory_space<vmem>>, %arg3: memref<2x1x128xf32, #tpu.memory_space<vmem>>, %arg4: memref<3x128xf32, #tpu.memory_space<vmem>>, %arg5: memref<64x4xbf16, #tpu.memory_space<vmem>>, %arg6: memref<4x128xbf16, #tpu.memory_space<vmem>>, %arg7: memref<64x128xf32, #tpu.memory_space<vmem>>) attributes {dimension_semantics = [#tpu.dimension_semantics<parallel>], iteration_bounds = array<i64: 2>, scalar_prefetch = 0 : i64, scratch_operands = 0 : i64, tpu.core_type = #tpu.core_type<tc>, window_params = [{transform_indices = @transform_0, window_bounds = array<i64: 64, 128>}, {pipeline_mode = #tpu.pipeline_mode<synchronous>, transform_indices = @transform_1, window_bounds = array<i64: 2, 1, 128>}, {pipeline_mode = #tpu.pipeline_mode<synchronous>, transform_indices = @transform_2, window_bounds = array<i64: 2, 1, 128>}, {pipeline_mode = #tpu.pipeline_mode<synchronous>, transform_indices = @transform_3, window_bounds = array<i64: 3, 128>}, {transform_indices = @transform_4, window_bounds = array<i64: 64, 4>}, {pipeline_mode = #tpu.pipeline_mode<synchronous>, transform_indices = @transform_5, window_bounds = array<i64: 4, 128>}, {transform_indices = @transform_6, window_bounds = array<i64: 64, 128>}]} {
    %c0 = arith.constant 0 : index
    %c0_0 = arith.constant 0 : index
    %0 = vector.load %arg4[%c0, %c0_0] : memref<3x128xf32, #tpu.memory_space<vmem>>, vector<3x128xf32>
    %1 = vector.extract_strided_slice %0 {offsets = [0, 0], sizes = [1, 128], strides = [1, 1]} : vector<3x128xf32> to vector<1x128xf32>
    %2 = vector.extract_strided_slice %0 {offsets = [1, 0], sizes = [1, 128], strides = [1, 1]} : vector<3x128xf32> to vector<1x128xf32>
    %c0_1 = arith.constant 0 : index
    %c0_2 = arith.constant 0 : index
    %c0_3 = arith.constant 0 : index
    %3 = vector.load %arg2[%c0_1, %c0_2, %c0_3] : memref<2x1x128xf32, #tpu.memory_space<vmem>>, vector<2x1x128xf32>
    %cst = arith.constant dense<0.000000e+00> : vector<1x128xf32>
    %4 = vector.multi_reduction <add>, %3, %cst [0] : vector<2x1x128xf32> to vector<1x128xf32>
    %cst_4 = arith.constant 7.812500e-03 : f32
    %5 = vector.broadcast %cst_4 : f32 to vector<1x128xf32>
    %6 = arith.mulf %4, %5 : vector<1x128xf32>
    %c0_5 = arith.constant 0 : index
    %c0_6 = arith.constant 0 : index
    %c0_7 = arith.constant 0 : index
    %7 = vector.load %arg3[%c0_5, %c0_6, %c0_7] : memref<2x1x128xf32, #tpu.memory_space<vmem>>, vector<2x1x128xf32>
    %cst_8 = arith.constant dense<0.000000e+00> : vector<1x128xf32>
    %8 = vector.multi_reduction <add>, %7, %cst_8 [0] : vector<2x1x128xf32> to vector<1x128xf32>
    %cst_9 = arith.constant 7.812500e-03 : f32
    %9 = vector.broadcast %cst_9 : f32 to vector<1x128xf32>
    %10 = arith.mulf %8, %9 : vector<1x128xf32>
    %11 = arith.mulf %6, %6 : vector<1x128xf32>
    %12 = arith.subf %10, %11 : vector<1x128xf32>
    %cst_10 = arith.constant 9.99999974E-6 : f32
    %13 = vector.broadcast %cst_10 : f32 to vector<1x128xf32>
    %14 = arith.addf %12, %13 : vector<1x128xf32>
    %15 = math.rsqrt %14 : vector<1x128xf32>
    %16 = arith.mulf %15, %1 : vector<1x128xf32>
    %17 = arith.mulf %6, %16 : vector<1x128xf32>
    %18 = arith.subf %2, %17 : vector<1x128xf32>
    %c0_11 = arith.constant 0 : index
    %c0_12 = arith.constant 0 : index
    %19 = vector.load %arg1[%c0_11, %c0_12] : memref<64x128xbf16, #tpu.memory_space<vmem>>, vector<64x128xbf16>
    %20 = arith.extf %19 : vector<64x128xbf16> to vector<64x128xf32>
    %c0_13 = arith.constant 0 : index
    %c0_14 = arith.constant 0 : index
    %21 = vector.load %arg5[%c0_13, %c0_14] : memref<64x4xbf16, #tpu.memory_space<vmem>>, vector<64x4xbf16>
    %c0_15 = arith.constant 0 : index
    %c0_16 = arith.constant 0 : index
    %22 = vector.load %arg6[%c0_15, %c0_16] : memref<4x128xbf16, #tpu.memory_space<vmem>>, vector<4x128xbf16>
    %cst_17 = arith.constant dense<0.000000e+00> : vector<64x128xf32>
    %23 = tpu.matmul %21, %22, %cst_17 {dimension_numbers = #tpu.dot_dimension_numbers<[1], [0], [0], [1], [0, 0, 1, 1], [], []>} : vector<64x4xbf16>, vector<4x128xbf16>, vector<64x128xf32> -> vector<64x128xf32>
    %24 = vector.broadcast %16 : vector<1x128xf32> to vector<64x128xf32>
    %25 = arith.mulf %20, %24 : vector<64x128xf32>
    %26 = vector.broadcast %18 : vector<1x128xf32> to vector<64x128xf32>
    %27 = arith.addf %25, %26 : vector<64x128xf32>
    %28 = arith.addf %27, %23 : vector<64x128xf32>
    %29 = vector.extract_strided_slice %0 {offsets = [2, 0], sizes = [1, 128], strides = [1, 1]} : vector<3x128xf32> to vector<1x128xf32>
    %30 = vector.broadcast %29 : vector<1x128xf32> to vector<64x128xf32>
    %31 = arith.addf %28, %30 : vector<64x128xf32>
    %cst_18 = arith.constant 0.000000e+00 : f32
    %32 = vector.broadcast %cst_18 : f32 to vector<64x128xf32>
    %33 = arith.maximumf %31, %32 : vector<64x128xf32>
    %c0_19 = arith.constant 0 : index
    %c0_20 = arith.constant 0 : index
    %34 = vector.load %arg7[%c0_19, %c0_20] : memref<64x128xf32, #tpu.memory_space<vmem>>, vector<64x128xf32>
    tpu.vector_store %arg7[%c0_19, %c0_20], %33 {strides = array<i32>} : memref<64x128xf32, #tpu.memory_space<vmem>>, vector<64x128xf32>,
    return
  }
  func.func @transform_0(%arg0: i32) -> (i32, i32) {
    %c0_i32 = arith.constant 0 : i32
    %c0_i32_0 = arith.constant 0 : i32
    return %arg0, %c0_i32 : i32, i32
  }
  func.func @transform_1(%arg0: i32) -> (i32, i32, i32) {
    %c0_i32 = arith.constant 0 : i32
    %c0_i32_0 = arith.constant 0 : i32
    %c0_i32_1 = arith.constant 0 : i32
    %c0_i32_2 = arith.constant 0 : i32
    return %c0_i32, %c0_i32_0, %c0_i32_1 : i32, i32, i32
  }
  func.func @transform_2(%arg0: i32) -> (i32, i32, i32) {
    %c0_i32 = arith.constant 0 : i32
    %c0_i32_0 = arith.constant 0 : i32
    %c0_i32_1 = arith.constant 0 : i32
    %c0_i32_2 = arith.constant 0 : i32
    return %c0_i32, %c0_i32_0, %c0_i32_1 : i32, i32, i32
  }
  func.func @transform_3(%arg0: i32) -> (i32, i32) {
    %c0_i32 = arith.constant 0 : i32
    %c0_i32_0 = arith.constant 0 : i32
    %c0_i32_1 = arith.constant 0 : i32
    return %c0_i32, %c0_i32_0 : i32, i32
  }
  func.func @transform_4(%arg0: i32) -> (i32, i32) {
    %c0_i32 = arith.constant 0 : i32
    %c0_i32_0 = arith.constant 0 : i32
    return %arg0, %c0_i32 : i32, i32
  }
  func.func @transform_5(%arg0: i32) -> (i32, i32) {
    %c0_i32 = arith.constant 0 : i32
    %c0_i32_0 = arith.constant 0 : i32
    %c0_i32_1 = arith.constant 0 : i32
    return %c0_i32, %c0_i32_0 : i32, i32
  }
  func.func @transform_6(%arg0: i32) -> (i32, i32) {
    %c0_i32 = arith.constant 0 : i32
    %c0_i32_0 = arith.constant 0 : i32
    return %arg0, %c0_i32 : i32, i32
  }
}

</mosaic_0001>

<llo_original>
// kernel: residual_forward.4
$region0: #{residual_forward.4}
  #allocation0 [shape = 'u32[]', space=smem, size = 0x4, offset = 0x4, fixed_abs, tag = 'smem constant byte address 0x4 - core index']
  #allocation1 [shape = 'u32[144,128]{1,0:T(1,128)}', space=vmem, size = 0x12000, scoped, tag = 'internal scratch']
  %s0 = inlined_call_operand.vmem [shape: bf16[128,36], index: 0, kind: input, shape index: {}]
  %s1 = inlined_call_operand.vmem [shape: bf16[36,128], index: 1, kind: input, shape index: {}]
  %s2 = inlined_call_operand.vmem [shape: bf16[128,128], index: 2, kind: output, shape index: {0}]
  %s3 = inlined_call_operand.vmem [shape: f32[2,1,128], index: 3, kind: output, shape index: {1}]
  %s4 = inlined_call_operand.vmem [shape: f32[2,1,128], index: 4, kind: output, shape index: {2}]
  %5 = xla_tuple %s2, %s3, %s4
  %s6 = sld [smem:[#allocation0]]
  $region61: #{residual_forward.4} parent=0
    _
  %s8 = ssub.s32 1, %s6
  %s9 = scalar_select 0, %s8, %s6
  loop: start=0, step=1, limit=4
  $region2: #{residual_forward.4} parent=0 // loop_pre_header
    _
  $region3: #{residual_forward.4} parent=0 // loop_header
    %s11 = sphi 0, %s15
    %p12 = scmp.ge.s32.totalorder %s11, 4
    %s18 = sphi 0, %s30
    %s19 = sphi 0, %s26
    %s20 = sphi 0, %s18
    %s21 = sphi 0, %s19
    %s22 = sphi 0, %s20
    %s23 = sphi 0, %s21
    %s35 = sphi 0, %s37
    %s38 = sphi 0, %s35
    %s39 = sphi 0, %s38
    %s55 = sphi 0, %s39
    %s59 = sphi 0, %s59
    %s61 = sphi 0, %s59
    %s62 = sphi 0, %s61
    %s76 = sphi 0, %s62
    %s84 = sphi 0, %s86
    %s87 = sphi 0, %s84
    %s88 = sphi 0, %s87
    %s104 = sphi 0, %s88
    %s110 = sphi 0, %s112
    %s113 = sphi 0, %s110
    %s114 = sphi 0, %s113
    %s130 = sphi 0, %s114
    %s136 = sphi 0, %s138
    %s139 = sphi 0, %s136
    %s140 = sphi 0, %s139
    %s156 = sphi 0, %s140
  $region4: #{residual_forward.4} parent=0 // loop_header_branch
    %14 = sbr.rel (%p12) target = $region8
  $region5: #{residual_forward.4} parent=0 // loop_body
    %s16 = ssub.s32 %s11, 1
    %s17 = ssub.s32 %s11, 2
    %s24 = sadd.s32 1, %s19
    %p25 = scmp.ge.s32.totalorder %s24, 1
    %s26 = scalar_select %p25, 0, %s24
    %s27 = sadd.s32 1, %s18
    %s28 = scalar_select %p25, %s27, %s18
    %p29 = scmp.ge.s32.totalorder %s28, 2
    %s30 = scalar_select %p29, 0, %s28
    %s31 = sadd.s32 %s18, %s19
    %s32 = sadd.s32 %s30, %s26
    %s33 = ssub.s32 %s31, %s32
    %p34 = scmp.eq.s32.totalorder %s33, 0
    %s36 = sadd.s32 %s35, 1
    %s37 = scalar_select %p34, %s35, %s36
    %p40 = pneg %p34
    %p41 = scmp.eq.s32.totalorder %s11, 1
    %p42 = por %p40, %p41
    %p43 = scmp.ne.s32.totalorder %s35, %s38
    %p44 = scmp.eq.s32.totalorder %s11, 0
    %p45 = por %p43, %p44
    %p46 = scmp.ne.s32.totalorder %s35, %s38
    %p47 = scmp.eq.s32.totalorder %s16, 1
    %p48 = por %p46, %p47
    %p49 = scmp.ne.s32.totalorder %s38, %s39
    %p50 = scmp.eq.s32.totalorder %s16, 0
    %p51 = por %p49, %p50
    %p52 = scmp.ne.s32.totalorder %s38, %s39
    %p53 = scmp.eq.s32.totalorder %s17, 1
    %p54 = por %p52, %p53
    %p56 = scmp.ne.s32.totalorder %s39, %s55
    %p57 = scmp.eq.s32.totalorder %s17, 0
    %p58 = por %p56, %p57
    %s60 = sadd.s32 %s59, 1
    %p63 = scmp.eq.s32.totalorder %s11, 1
    %p64 = scmp.ne.s32.totalorder %s59, %s61
    %p65 = scmp.eq.s32.totalorder %s11, 0
    %p66 = por %p64, %p65
    %p67 = scmp.ne.s32.totalorder %s59, %s61
    %p68 = scmp.eq.s32.totalorder %s16, 1
    %p69 = por %p67, %p68
    %p70 = scmp.ne.s32.totalorder %s61, %s62
    %p71 = scmp.eq.s32.totalorder %s16, 0
    %p72 = por %p70, %p71
    %p73 = scmp.ne.s32.totalorder %s61, %s62
    %p74 = scmp.eq.s32.totalorder %s17, 1
    %p75 = por %p73, %p74
    %p77 = scmp.ne.s32.totalorder %s62, %s76
    %p78 = scmp.eq.s32.totalorder %s17, 0
    %p79 = por %p77, %p78
    %s80 = sadd.s32 %s18, %s19
    %s81 = sadd.s32 %s30, %s26
    %s82 = ssub.s32 %s80, %s81
    %p83 = scmp.eq.s32.totalorder %s82, 0
    %s85 = sadd.s32 %s84, 1
    %s86 = scalar_select %p83, %s84, %s85
    %p89 = pneg %p83
    %p90 = scmp.eq.s32.totalorder %s11, 1
    %p91 = por %p89, %p90
    %p92 = scmp.ne.s32.totalorder %s84, %s87
    %p93 = scmp.eq.s32.totalorder %s11, 0
    %p94 = por %p92, %p93
    %p95 = scmp.ne.s32.totalorder %s84, %s87
    %p96 = scmp.eq.s32.totalorder %s16, 1
    %p97 = por %p95, %p96
    %p98 = scmp.ne.s32.totalorder %s87, %s88
    %p99 = scmp.eq.s32.totalorder %s16, 0
    %p100 = por %p98, %p99
    %p101 = scmp.ne.s32.totalorder %s87, %s88
    %p102 = scmp.eq.s32.totalorder %s17, 1
    %p103 = por %p101, %p102
    %p105 = scmp.ne.s32.totalorder %s88, %s104
    %p106 = scmp.eq.s32.totalorder %s17, 0
    %p107 = por %p105, %p106
    %s108 = ssub.s32 %s18, %s30
    %p109 = scmp.eq.s32.totalorder %s108, 0
    %s111 = sadd.s32 %s110, 1
    %s112 = scalar_select %p109, %s110, %s111
    %p115 = pneg %p109
    %p116 = scmp.eq.s32.totalorder %s11, 1
    %p117 = por %p115, %p116
    %p118 = scmp.ne.s32.totalorder %s110, %s113
    %p119 = scmp.eq.s32.totalorder %s11, 0
    %p120 = por %p118, %p119
    %p121 = scmp.ne.s32.totalorder %s110, %s113
    %p122 = scmp.eq.s32.totalorder %s16, 1
    %p123 = por %p121, %p122
    %p124 = scmp.ne.s32.totalorder %s113, %s114
    %p125 = scmp.eq.s32.totalorder %s16, 0
    %p126 = por %p124, %p125
    %p127 = scmp.ne.s32.totalorder %s113, %s114
    %p128 = scmp.eq.s32.totalorder %s17, 1
    %p129 = por %p127, %p128
    %p131 = scmp.ne.s32.totalorder %s114, %s130
    %p132 = scmp.eq.s32.totalorder %s17, 0
    %p133 = por %p131, %p132
    %s134 = ssub.s32 %s18, %s30
    %p135 = scmp.eq.s32.totalorder %s134, 0
    %s137 = sadd.s32 %s136, 1
    %s138 = scalar_select %p135, %s136, %s137
    %p141 = pneg %p135
    %p142 = scmp.eq.s32.totalorder %s11, 1
    %p143 = por %p141, %p142
    %p144 = scmp.ne.s32.totalorder %s136, %s139
    %p145 = scmp.eq.s32.totalorder %s11, 0
    %p146 = por %p144, %p145
    %p147 = scmp.ne.s32.totalorder %s136, %s139
    %p148 = scmp.eq.s32.totalorder %s16, 1
    %p149 = por %p147, %p148
    %p150 = scmp.ne.s32.totalorder %s139, %s140
    %p151 = scmp.eq.s32.totalorder %s16, 0
    %p152 = por %p150, %p151
    %p153 = scmp.ne.s32.totalorder %s139, %s140
    %p154 = scmp.eq.s32.totalorder %s17, 1
    %p155 = por %p153, %p154
    %p157 = scmp.ne.s32.totalorder %s140, %s156
    %p158 = scmp.eq.s32.totalorder %s17, 0
    %p159 = por %p157, %p158
    %p160 = scmp.le.s32.totalorder 1, %s11
    %p161 = scmp.lt.s32.totalorder %s11, 3
    %p162 = pnand %p160, %p161
    %p163 = pneg %p162
    // Predicated region
    $region9: #{residual_forward.4} parent=5 // pred_check
      _
    $region10: #{residual_forward.4} parent=5 // pred_check_branch
      %165 = sbr.rel (%p162) target = $region12
    $region11: #{residual_forward.4} parent=5 // pred_region
      %s166 = ssub.s32 %s11, 1
      // Predicated region
      $region13: #{residual_forward.4} parent=11 // pred_check
        %p167 = pneg %p72
      $region14: #{residual_forward.4} parent=11 // pred_check_branch
        %169 = sbr.rel (%p167) target = $region16
      $region15: #{residual_forward.4} parent=11 // pred_region
        _
      $region16: #{residual_forward.4} parent=11 // pred_fallthru
        _
    $region12: #{residual_forward.4} parent=5 // pred_fallthru
      _
    %p170 = scmp.lt.s32.totalorder %s11, 2
    // Predicated region
    $region17: #{residual_forward.4} parent=5 // pred_check
      %p171 = pneg %p170
    $region18: #{residual_forward.4} parent=5 // pred_check_branch
      %173 = sbr.rel (%p171) target = $region20
    $region19: #{residual_forward.4} parent=5 // pred_region
      // Predicated region
      $region21: #{residual_forward.4} parent=19 // pred_check
        %p174 = pneg %p45
      $region22: #{residual_forward.4} parent=19 // pred_check_branch
        %176 = sbr.rel (%p174) target = $region24
      $region23: #{residual_forward.4} parent=19 // pred_region
        %s177 = sadd.s32 %s18, %s19
        %s178 = smul.u32 8, %s177
        %p179 = scmp.lt.s32.totalorder %s178, 15
        %s180 = scalar_select %p179, %s178, 15
        %s181 = smul.addr %s180, 4
        %s182 = scalar_lea.vmem %s0, %s181
        %s183 = sadd.s32 %s18, %s19
        %s184 = smul.u32 8, %s183
      $region24: #{residual_forward.4} parent=19 // pred_fallthru
        _
    $region20: #{residual_forward.4} parent=5 // pred_fallthru
      _
    %p185 = scmp.le.s32.totalorder 1, %s11
    %p186 = scmp.lt.s32.totalorder %s11, 3
    %p187 = pnand %p185, %p186
    %p188 = pneg %p187
    // Predicated region
    $region25: #{residual_forward.4} parent=5 // pred_check
      _
    $region26: #{residual_forward.4} parent=5 // pred_check_branch
      %190 = sbr.rel (%p187) target = $region28
    $region27: #{residual_forward.4} parent=5 // pred_region
      %s191 = ssub.s32 %s11, 1
      %s192 = sadd.s32 %s20, %s21
      %s193 = smul.u32 8, %s192
      %p194 = scmp.lt.s32.totalorder %s193, 15
      %s195 = scalar_select %p194, %s193, 15
      %s196 = smul.addr %s195, 4
      %s197 = scalar_lea.vmem %s0, %s196
      %p198 = pneg %p51
      %p199 = pneg %p48
      %p200 = pneg %p72
      %p201 = pneg %p69
      %p202 = pneg %p100
      %p203 = pneg %p97
      %s204 = sadd.s32 %s20, %s21
      %s205 = smul.u32 8, %s204
      %p206 = scmp.lt.s32.totalorder %s205, 15
      %s207 = scalar_select %p206, %s205, 15
      %s208 = smul.addr %s207, 4
      %s209 = scalar_lea.vmem %s2, %s208
      %p210 = pneg %p126
      %p211 = pneg %p123
      %p212 = scmp.lt.s32.totalorder %s20, 1
      %s213 = scalar_select %p212, %s20, 1
      %s214 = scalar_lea.vmem %s3, %s213
      %p215 = pneg %p152
      %p216 = pneg %p149
      %p217 = scmp.lt.s32.totalorder %s20, 1
      %s218 = scalar_select %p217, %s20, 1
      %s219 = scalar_lea.vmem %s4, %s218
      %s220 = sadd.s32 %s20, %s21
      %s221 = smul.u32 8, %s220
      %p222 = scmp.lt.s32.totalorder %s221, 15
      %s223 = scalar_select %p222, %s221, 15
      %s224 = smul.addr %s223, 4
      %s225 = scalar_lea.vmem %s0, %s224
      %s226 = sadd.s32 %s20, %s21
      %s227 = smul.u32 8, %s226
      %s228 = sadd.s32 %s20, %s21
      %s229 = smul.u32 8, %s228
      %p230 = scmp.lt.s32.totalorder %s229, 15
      %s231 = scalar_select %p230, %s229, 15
      %s232 = smul.addr %s231, 4
      %s233 = scalar_lea.vmem %s2, %s232
      %s234 = sadd.s32 %s20, %s21
      %s235 = smul.u32 8, %s234
      %p236 = scmp.lt.s32.totalorder %s20, 1
      %s237 = scalar_select %p236, %s20, 1
      %s238 = scalar_lea.vmem %s3, %s237
      %p239 = scmp.lt.s32.totalorder %s20, 1
      %s240 = scalar_select %p239, %s20, 1
      %s241 = scalar_lea.vmem %s4, %s240
      %p243 = scmp.eq.s32.totalorder %s21, 0
      // Predicated region
      $region29: #{residual_forward.4} parent=27 // pred_check
        %p244 = pneg %p243
      $region30: #{residual_forward.4} parent=27 // pred_check_branch
        %246 = sbr.rel (%p244) target = $region32
      $region31: #{residual_forward.4} parent=27 // pred_region
        %247 = vst [vmem:[%s238] sm:$0x1] 0.0
        %248 = vst [vmem:[%s241] sm:$0x1] 0.0
      $region32: #{residual_forward.4} parent=27 // pred_fallthru
        _
      %v249 = vld [vmem:[%s225] sm:$0xf]
      %v250 = vld [vmem:[%s225 + $0x4] sm:$0xf]
      %v251 = vld [vmem:[%s225 + $0x8] sm:$0xf]
      %v252 = vld [vmem:[%s225 + $0xc] sm:$0xf]
      %v253 = vld [vmem:[%s225 + $0x10] sm:$0xf]
      %v254 = vld [vmem:[%s225 + $0x14] sm:$0xf]
      %v255 = vld [vmem:[%s225 + $0x18] sm:$0xf]
      %v256 = vld [vmem:[%s225 + $0x1c] sm:$0xf]
      %v257 = vld [vmem:[%s1] sm:$0xf]
      %v258 = vld [vmem:[%s1 + $0x4] sm:$0xf]
      %v259 = vld [vmem:[%s1 + $0x8] sm:$0xf]
      %v260 = vld [vmem:[%s1 + $0xc] sm:$0xf]
      %v261 = vld [vmem:[%s1 + $0x10] sm:$0x3]
      %v270 = vunpack.c.l.b16 %v249
      %v271 = vunpack.c.l.b16 %v250
      %v272 = vunpack.c.l.b16 %v251
      %v273 = vunpack.c.l.b16 %v252
      %v274 = vunpack.c.l.b16 %v253
      %v275 = vunpack.c.l.b16 %v254
      %v276 = vunpack.c.l.b16 %v255
      %v277 = vunpack.c.l.b16 %v256
      %v278 = vpack.c.b16 %v271, %v270
      %v279 = vpack.c.b16 %v273, %v272
      %v280 = vpack.c.b16 %v275, %v274
      %v281 = vpack.c.b16 %v277, %v276
      %v287 = vunpack.c.l.b16 %v257
      %v288 = vunpack.c.l.b16 %v258
      %v289 = vunpack.c.l.b16 %v259
      %v290 = vunpack.c.l.b16 %v260
      %v291 = vunpack.c.l.b16 %v261
      %v292 = vpack.c.b16 %v288, %v287
      %v293 = vpack.c.b16 %v290, %v289
      %v294 = vpack.c.b16 %v291, %v291
      %vm297 = vcmask 293888
      %v299 = vsel %vm297, %v278, 0
      %v302 = vsel %vm297, %v279, 0
      %v305 = vsel %vm297, %v280, 0
      %v308 = vsel %vm297, %v281, 0
      %vm310 = vcmask 1041408
      %v312 = vsel %vm310, %v294, 0
      %314 = vmatprep.subr.bf16.mxu0 0
      %315 = vmatpush1.bf16.msra.mxu0 %v292
      %316 = vmatprep.subr.bf16.mxu0 0
      %317 = vmatpush1.bf16.msra.mxu0 %v293
      %318 = vmatprep.subr.bf16.mxu0 0
      %319 = vmatpush1.bf16.msra.mxu0 %v312
      %320 = vmatprep.subr.bf16.mxu0 0
      %321 = vmatpush1.bf16.msra.mxu0 0
      %322 = vmatprep.subr.bf16.mxu0 0
      %323 = vmatpush1.bf16.msra.mxu0 0
      %324 = vmatprep.subr.bf16.mxu0 0
      %325 = vmatpush1.bf16.msra.mxu0 0
      %326 = vmatprep.subr.bf16.mxu0 0
      %327 = vmatpush1.bf16.msra.mxu0 0
      %328 = vmatprep.subr.bf16.mxu0 0
      %329 = vmatpush1.bf16.msra.mxu0 0
      %330 = vmatprep.subr.bf16.mxu0 0
      %331 = vmatpush1.bf16.msra.mxu0 0
      %332 = vmatprep.subr.bf16.mxu0 0
      %333 = vmatpush1.bf16.msra.mxu0 0
      %334 = vmatprep.subr.bf16.mxu0 0
      %335 = vmatpush1.bf16.msra.mxu0 0
      %336 = vmatprep.subr.bf16.mxu0 0
      %337 = vmatpush1.bf16.msra.mxu0 0
      %338 = vmatprep.subr.bf16.mxu0 0
      %339 = vmatpush1.bf16.msra.mxu0 0
      %340 = vmatprep.subr.bf16.mxu0 0
      %341 = vmatpush1.bf16.msra.mxu0 0
      %342 = vmatprep.subr.bf16.mxu0 0
      %343 = vmatpush1.bf16.msra.mxu0 0
      %344 = vmatprep.subr.bf16.mxu0 0
      %345 = vmatpush1.bf16.msra.mxu0 0
      %346 = vmatprep.mubr.bf16.mxu0 0
      %347 = vmatmul.mubr.bf16.gmra.mrb[0].mxu0 %v299
      %v348 = vpop.f32.mrb[0].mxu0
      %v349 = vadd.f32 0.0, %v348
      %v350 = vpop.f32.mrb[0].mxu0
      %v351 = vpop.f32.mrb[0].mxu0
      %v352 = vadd.f32 0.0, %v351
      %v353 = vpop.f32.mrb[0].mxu0
      %354 = vmatprep.mubr.bf16.mxu0 0
      %355 = vmatmul.mubr.bf16.gmra.mrb[0].mxu0 %v302
      %v356 = vpop.f32.mrb[0].mxu0
      %v357 = vadd.f32 0.0, %v356
      %v358 = vpop.f32.mrb[0].mxu0
      %v359 = vpop.f32.mrb[0].mxu0
      %v360 = vadd.f32 0.0, %v359
      %v361 = vpop.f32.mrb[0].mxu0
      %362 = vmatprep.mubr.bf16.mxu0 0
      %363 = vmatmul.mubr.bf16.gmra.mrb[0].mxu0 %v305
      %v364 = vpop.f32.mrb[0].mxu0
      %v365 = vadd.f32 0.0, %v364
      %v366 = vpop.f32.mrb[0].mxu0
      %v367 = vpop.f32.mrb[0].mxu0
      %v368 = vadd.f32 0.0, %v367
      %v369 = vpop.f32.mrb[0].mxu0
      %370 = vmatprep.mubr.bf16.mxu0 0
      %371 = vmatmul.mubr.bf16.gmra.mrb[0].mxu0 %v308
      %v372 = vpop.f32.mrb[0].mxu0
      %v373 = vadd.f32 0.0, %v372
      %v374 = vpop.f32.mrb[0].mxu0
      %v375 = vpop.f32.mrb[0].mxu0
      %v376 = vadd.f32 0.0, %v375
      %v377 = vpop.f32.mrb[0].mxu0
      %378 = vdwg.mxu0
      %v379 = vpack.c.bf16 %v352, %v349
      %v380 = vpack.c.bf16 %v360, %v357
      %v381 = vpack.c.bf16 %v368, %v365
      %v382 = vpack.c.bf16 %v376, %v373
      %v387 = vunpack.c.l.b16 %v379
      %v388 = vunpack.c.h.b16 %v379
      %v389 = vunpack.c.l.b16 %v380
      %v390 = vunpack.c.h.b16 %v380
      %v391 = vunpack.c.l.b16 %v381
      %v392 = vunpack.c.h.b16 %v381
      %v393 = vunpack.c.l.b16 %v382
      %v394 = vunpack.c.h.b16 %v382
      %v395 = vpack.c.b16 %v387, %v387
      %v396 = vpack.c.b16 %v388, %v388
      %v397 = vpack.c.b16 %v389, %v389
      %v398 = vpack.c.b16 %v390, %v390
      %v399 = vpack.c.b16 %v391, %v391
      %v400 = vpack.c.b16 %v392, %v392
      %v401 = vpack.c.b16 %v393, %v393
      %v402 = vpack.c.b16 %v394, %v394
      %411 = vst [vmem:[%s233] sm:$0xf] %v395
      %412 = vst [vmem:[%s233 + $0x4] sm:$0xf] %v396
      %413 = vst [vmem:[%s233 + $0x8] sm:$0xf] %v397
      %414 = vst [vmem:[%s233 + $0xc] sm:$0xf] %v398
      %415 = vst [vmem:[%s233 + $0x10] sm:$0xf] %v399
      %416 = vst [vmem:[%s233 + $0x14] sm:$0xf] %v400
      %417 = vst [vmem:[%s233 + $0x18] sm:$0xf] %v401
      %418 = vst [vmem:[%s233 + $0x1c] sm:$0xf] %v402
      %v419 = vld [vmem:[%s238] sm:$0x1]
      %v420 = vadd.f32 %v349, %v352
      %v421 = vadd.f32 %v420, %v357
      %v422 = vadd.f32 %v421, %v360
      %v423 = vadd.f32 %v422, %v365
      %v424 = vadd.f32 %v423, %v368
      %v425 = vadd.f32 %v424, %v373
      %v426 = vadd.f32 %v425, %v376
      %v427 = vrot.slane %v426, 4
      %v428 = vadd.f32 %v426, %v427
      %v429 = vrot.slane %v428, 2
      %v430 = vadd.f32 %v428, %v429
      %v431 = vrot.slane %v430, 1
      %v432 = vadd.f32 %v430, %v431
      %v433 = vadd.f32 %v419, %v432
      %434 = vst [vmem:[%s238] sm:$0x1] %v433
      %v435 = vld [vmem:[%s241] sm:$0x1]
      %v436 = vmul.f32 %v349, %v349
      %v437 = vmul.f32 %v352, %v352
      %v438 = vmul.f32 %v357, %v357
      %v439 = vmul.f32 %v360, %v360
      %v440 = vmul.f32 %v365, %v365
      %v441 = vmul.f32 %v368, %v368
      %v442 = vmul.f32 %v373, %v373
      %v443 = vmul.f32 %v376, %v376
      %v444 = vadd.f32 %v436, %v437
      %v445 = vadd.f32 %v444, %v438
      %v446 = vadd.f32 %v445, %v439
      %v447 = vadd.f32 %v446, %v440
      %v448 = vadd.f32 %v447, %v441
      %v449 = vadd.f32 %v448, %v442
      %v450 = vadd.f32 %v449, %v443
      %v451 = vrot.slane %v450, 4
      %v452 = vadd.f32 %v450, %v451
      %v453 = vrot.slane %v452, 2
      %v454 = vadd.f32 %v452, %v453
      %v455 = vrot.slane %v454, 1
      %v456 = vadd.f32 %v454, %v455
      %v457 = vadd.f32 %v435, %v456
      %458 = vst [vmem:[%s241] sm:$0x1] %v457
      %s459 = sadd.s32 %s20, %s21
      %s460 = smul.u32 8, %s459
      %p461 = scmp.lt.s32.totalorder %s460, 15
      %s462 = scalar_select %p461, %s460, 15
      %s463 = smul.addr %s462, 4
      %s464 = scalar_lea.vmem %s2, %s463
      %p465 = scmp.lt.s32.totalorder %s20, 1
      %s466 = scalar_select %p465, %s20, 1
      %s467 = scalar_lea.vmem %s3, %s466
      %p468 = scmp.lt.s32.totalorder %s20, 1
      %s469 = scalar_select %p468, %s20, 1
      %s470 = scalar_lea.vmem %s4, %s469
      // Predicated region
      $region33: #{residual_forward.4} parent=27 // pred_check
        %p471 = pneg %p97
      $region34: #{residual_forward.4} parent=27 // pred_check_branch
        %473 = sbr.rel (%p471) target = $region36
      $region35: #{residual_forward.4} parent=27 // pred_region
        %s474 = sadd.s32 %s20, %s21
        %s475 = smul.u32 8, %s474
      $region36: #{residual_forward.4} parent=27 // pred_fallthru
        _
      // Predicated region
      $region37: #{residual_forward.4} parent=27 // pred_check
        %p476 = pneg %p123
      $region38: #{residual_forward.4} parent=27 // pred_check_branch
        %478 = sbr.rel (%p476) target = $region40
      $region39: #{residual_forward.4} parent=27 // pred_region
        _
      $region40: #{residual_forward.4} parent=27 // pred_fallthru
        _
      // Predicated region
      $region41: #{residual_forward.4} parent=27 // pred_check
        %p479 = pneg %p149
      $region42: #{residual_forward.4} parent=27 // pred_check_branch
        %481 = sbr.rel (%p479) target = $region44
      $region43: #{residual_forward.4} parent=27 // pred_region
        _
      $region44: #{residual_forward.4} parent=27 // pred_fallthru
        _
    $region28: #{residual_forward.4} parent=5 // pred_fallthru
      _
    %p482 = scmp.le.s32.totalorder 2, %s11
    // Predicated region
    $region45: #{residual_forward.4} parent=5 // pred_check
      %p483 = pneg %p482
    $region46: #{residual_forward.4} parent=5 // pred_check_branch
      %485 = sbr.rel (%p483) target = $region48
    $region47: #{residual_forward.4} parent=5 // pred_region
      %s486 = ssub.s32 %s11, 2
      // Predicated region
      $region49: #{residual_forward.4} parent=47 // pred_check
        %p487 = pneg %p103
      $region50: #{residual_forward.4} parent=47 // pred_check_branch
        %489 = sbr.rel (%p487) target = $region52
      $region51: #{residual_forward.4} parent=47 // pred_region
        %s490 = sadd.s32 %s22, %s23
        %s491 = smul.u32 8, %s490
        %p492 = scmp.lt.s32.totalorder %s491, 15
        %s493 = scalar_select %p492, %s491, 15
        %s494 = smul.addr %s493, 4
        %s495 = scalar_lea.vmem %s2, %s494
      $region52: #{residual_forward.4} parent=47 // pred_fallthru
        _
      // Predicated region
      $region53: #{residual_forward.4} parent=47 // pred_check
        %p496 = pneg %p129
      $region54: #{residual_forward.4} parent=47 // pred_check_branch
        %498 = sbr.rel (%p496) target = $region56
      $region55: #{residual_forward.4} parent=47 // pred_region
        %p499 = scmp.lt.s32.totalorder %s22, 1
        %s500 = scalar_select %p499, %s22, 1
        %s501 = scalar_lea.vmem %s3, %s500
      $region56: #{residual_forward.4} parent=47 // pred_fallthru
        _
      // Predicated region
      $region57: #{residual_forward.4} parent=47 // pred_check
        %p502 = pneg %p155
      $region58: #{residual_forward.4} parent=47 // pred_check_branch
        %504 = sbr.rel (%p502) target = $region60
      $region59: #{residual_forward.4} parent=47 // pred_region
        %p505 = scmp.lt.s32.totalorder %s22, 1
        %s506 = scalar_select %p505, %s22, 1
        %s507 = scalar_lea.vmem %s4, %s506
      $region60: #{residual_forward.4} parent=47 // pred_fallthru
        _
    $region48: #{residual_forward.4} parent=5 // pred_fallthru
      _
  $region6: #{residual_forward.4} parent=0 // loop_footer
    %s15 = sadd.s32 1, %s11
  $region7: #{residual_forward.4} parent=0 // loop_footer_branch
    %10 = sbr.rel target = $region3
  $region8: #{residual_forward.4} parent=0 // loop_exit
    _

// kernel: residual_forward.5
$region0: #{residual_forward.5}
  #allocation0 [shape = 'u32[]', space=smem, size = 0x4, offset = 0x4, fixed_abs, tag = 'smem constant byte address 0x4 - core index']
  #allocation1 [shape = 'u32[144,128]{1,0:T(1,128)}', space=vmem, size = 0x12000, scoped, tag = 'internal scratch']
  %s0 = inlined_call_operand.vmem [shape: bf16[128,128], index: 0, kind: input, shape index: {}]
  %s1 = inlined_call_operand.vmem [shape: f32[2,1,128], index: 1, kind: input, shape index: {}]
  %s2 = inlined_call_operand.vmem [shape: f32[2,1,128], index: 2, kind: input, shape index: {}]
  %s3 = inlined_call_operand.vmem [shape: f32[2,128], index: 3, kind: input, shape index: {}]
  %s4 = inlined_call_operand.vmem [shape: bf16[128,128], index: 4, kind: output, shape index: {}]
  %s5 = sld [smem:[#allocation0]]
  $region49: #{residual_forward.5} parent=0
    _
  %s7 = ssub.s32 1, %s5
  %s8 = scalar_select 0, %s7, %s5
  loop: start=0, step=1, limit=4
  $region2: #{residual_forward.5} parent=0 // loop_pre_header
    _
  $region3: #{residual_forward.5} parent=0 // loop_header
    %s10 = sphi 0, %s14
    %p11 = scmp.ge.s32.totalorder %s10, 4
    %s20 = sphi 0, %s22
    %s23 = sphi 0, %s20
    %s24 = sphi 0, %s23
    %s40 = sphi 0, %s24
    %s44 = sphi 0, %s44
    %s46 = sphi 0, %s44
    %s47 = sphi 0, %s46
    %s61 = sphi 0, %s47
    %s65 = sphi 0, %s65
    %s67 = sphi 0, %s65
    %s68 = sphi 0, %s67
    %s82 = sphi 0, %s68
    %s86 = sphi 0, %s86
    %s88 = sphi 0, %s86
    %s89 = sphi 0, %s88
    %s103 = sphi 0, %s89
    %s109 = sphi 0, %s111
    %s112 = sphi 0, %s109
    %s113 = sphi 0, %s112
    %s129 = sphi 0, %s113
  $region4: #{residual_forward.5} parent=0 // loop_header_branch
    %13 = sbr.rel (%p11) target = $region8
  $region5: #{residual_forward.5} parent=0 // loop_body
    %s15 = ssub.s32 %s10, 1
    %s16 = ssub.s32 %s10, 2
    %s17 = sadd.s32 %s10, 1
    %s18 = ssub.s32 %s10, %s17
    %p19 = scmp.eq.s32.totalorder %s18, 0
    %s21 = sadd.s32 %s20, 1
    %s22 = scalar_select %p19, %s20, %s21
    %p25 = pneg %p19
    %p26 = scmp.eq.s32.totalorder %s10, 1
    %p27 = por %p25, %p26
    %p28 = scmp.ne.s32.totalorder %s20, %s23
    %p29 = scmp.eq.s32.totalorder %s10, 0
    %p30 = por %p28, %p29
    %p31 = scmp.ne.s32.totalorder %s20, %s23
    %p32 = scmp.eq.s32.totalorder %s15, 1
    %p33 = por %p31, %p32
    %p34 = scmp.ne.s32.totalorder %s23, %s24
    %p35 = scmp.eq.s32.totalorder %s15, 0
    %p36 = por %p34, %p35
    %p37 = scmp.ne.s32.totalorder %s23, %s24
    %p38 = scmp.eq.s32.totalorder %s16, 1
    %p39 = por %p37, %p38
    %p41 = scmp.ne.s32.totalorder %s24, %s40
    %p42 = scmp.eq.s32.totalorder %s16, 0
    %p43 = por %p41, %p42
    %s45 = sadd.s32 %s44, 1
    %p48 = scmp.eq.s32.totalorder %s10, 1
    %p49 = scmp.ne.s32.totalorder %s44, %s46
    %p50 = scmp.eq.s32.totalorder %s10, 0
    %p51 = por %p49, %p50
    %p52 = scmp.ne.s32.totalorder %s44, %s46
    %p53 = scmp.eq.s32.totalorder %s15, 1
    %p54 = por %p52, %p53
    %p55 = scmp.ne.s32.totalorder %s46, %s47
    %p56 = scmp.eq.s32.totalorder %s15, 0
    %p57 = por %p55, %p56
    %p58 = scmp.ne.s32.totalorder %s46, %s47
    %p59 = scmp.eq.s32.totalorder %s16, 1
    %p60 = por %p58, %p59
    %p62 = scmp.ne.s32.totalorder %s47, %s61
    %p63 = scmp.eq.s32.totalorder %s16, 0
    %p64 = por %p62, %p63
    %s66 = sadd.s32 %s65, 1
    %p69 = scmp.eq.s32.totalorder %s10, 1
    %p70 = scmp.ne.s32.totalorder %s65, %s67
    %p71 = scmp.eq.s32.totalorder %s10, 0
    %p72 = por %p70, %p71
    %p73 = scmp.ne.s32.totalorder %s65, %s67
    %p74 = scmp.eq.s32.totalorder %s15, 1
    %p75 = por %p73, %p74
    %p76 = scmp.ne.s32.totalorder %s67, %s68
    %p77 = scmp.eq.s32.totalorder %s15, 0
    %p78 = por %p76, %p77
    %p79 = scmp.ne.s32.totalorder %s67, %s68
    %p80 = scmp.eq.s32.totalorder %s16, 1
    %p81 = por %p79, %p80
    %p83 = scmp.ne.s32.totalorder %s68, %s82
    %p84 = scmp.eq.s32.totalorder %s16, 0
    %p85 = por %p83, %p84
    %s87 = sadd.s32 %s86, 1
    %p90 = scmp.eq.s32.totalorder %s10, 1
    %p91 = scmp.ne.s32.totalorder %s86, %s88
    %p92 = scmp.eq.s32.totalorder %s10, 0
    %p93 = por %p91, %p92
    %p94 = scmp.ne.s32.totalorder %s86, %s88
    %p95 = scmp.eq.s32.totalorder %s15, 1
    %p96 = por %p94, %p95
    %p97 = scmp.ne.s32.totalorder %s88, %s89
    %p98 = scmp.eq.s32.totalorder %s15, 0
    %p99 = por %p97, %p98
    %p100 = scmp.ne.s32.totalorder %s88, %s89
    %p101 = scmp.eq.s32.totalorder %s16, 1
    %p102 = por %p100, %p101
    %p104 = scmp.ne.s32.totalorder %s89, %s103
    %p105 = scmp.eq.s32.totalorder %s16, 0
    %p106 = por %p104, %p105
    %s107 = ssub.s32 %s10, %s17
    %p108 = scmp.eq.s32.totalorder %s107, 0
    %s110 = sadd.s32 %s109, 1
    %s111 = scalar_select %p108, %s109, %s110
    %p114 = pneg %p108
    %p115 = scmp.eq.s32.totalorder %s10, 1
    %p116 = por %p114, %p115
    %p117 = scmp.ne.s32.totalorder %s109, %s112
    %p118 = scmp.eq.s32.totalorder %s10, 0
    %p119 = por %p117, %p118
    %p120 = scmp.ne.s32.totalorder %s109, %s112
    %p121 = scmp.eq.s32.totalorder %s15, 1
    %p122 = por %p120, %p121
    %p123 = scmp.ne.s32.totalorder %s112, %s113
    %p124 = scmp.eq.s32.totalorder %s15, 0
    %p125 = por %p123, %p124
    %p126 = scmp.ne.s32.totalorder %s112, %s113
    %p127 = scmp.eq.s32.totalorder %s16, 1
    %p128 = por %p126, %p127
    %p130 = scmp.ne.s32.totalorder %s113, %s129
    %p131 = scmp.eq.s32.totalorder %s16, 0
    %p132 = por %p130, %p131
    %p133 = scmp.le.s32.totalorder 1, %s10
    %p134 = scmp.lt.s32.totalorder %s10, 3
    %p135 = pnand %p133, %p134
    %p136 = pneg %p135
    // Predicated region
    $region9: #{residual_forward.5} parent=5 // pred_check
      _
    $region10: #{residual_forward.5} parent=5 // pred_check_branch
      %138 = sbr.rel (%p135) target = $region12
    $region11: #{residual_forward.5} parent=5 // pred_region
      %s139 = ssub.s32 %s10, 1
      // Predicated region
      $region13: #{residual_forward.5} parent=11 // pred_check
        %p140 = pneg %p57
      $region14: #{residual_forward.5} parent=11 // pred_check_branch
        %142 = sbr.rel (%p140) target = $region16
      $region15: #{residual_forward.5} parent=11 // pred_region
        _
      $region16: #{residual_forward.5} parent=11 // pred_fallthru
        _
      // Predicated region
      $region17: #{residual_forward.5} parent=11 // pred_check
        %p143 = pneg %p78
      $region18: #{residual_forward.5} parent=11 // pred_check_branch
        %145 = sbr.rel (%p143) target = $region20
      $region19: #{residual_forward.5} parent=11 // pred_region
        _
      $region20: #{residual_forward.5} parent=11 // pred_fallthru
        _
      // Predicated region
      $region21: #{residual_forward.5} parent=11 // pred_check
        %p146 = pneg %p99
      $region22: #{residual_forward.5} parent=11 // pred_check_branch
        %148 = sbr.rel (%p146) target = $region24
      $region23: #{residual_forward.5} parent=11 // pred_region
        _
      $region24: #{residual_forward.5} parent=11 // pred_fallthru
        _
    $region12: #{residual_forward.5} parent=5 // pred_fallthru
      _
    %p149 = scmp.lt.s32.totalorder %s10, 2
    // Predicated region
    $region25: #{residual_forward.5} parent=5 // pred_check
      %p150 = pneg %p149
    $region26: #{residual_forward.5} parent=5 // pred_check_branch
      %152 = sbr.rel (%p150) target = $region28
    $region27: #{residual_forward.5} parent=5 // pred_region
      // Predicated region
      $region29: #{residual_forward.5} parent=27 // pred_check
        %p153 = pneg %p30
      $region30: #{residual_forward.5} parent=27 // pred_check_branch
        %155 = sbr.rel (%p153) target = $region32
      $region31: #{residual_forward.5} parent=27 // pred_region
        %s156 = smul.u32 8, %s10
        %p157 = scmp.lt.s32.totalorder %s156, 15
        %s158 = scalar_select %p157, %s156, 15
        %s159 = smul.addr %s158, 4
        %s160 = scalar_lea.vmem %s0, %s159
        %s161 = smul.u32 8, %s10
      $region32: #{residual_forward.5} parent=27 // pred_fallthru
        _
    $region28: #{residual_forward.5} parent=5 // pred_fallthru
      _
    %p162 = scmp.le.s32.totalorder 1, %s10
    %p163 = scmp.lt.s32.totalorder %s10, 3
    %p164 = pnand %p162, %p163
    %p165 = pneg %p164
    // Predicated region
    $region33: #{residual_forward.5} parent=5 // pred_check
      _
    $region34: #{residual_forward.5} parent=5 // pred_check_branch
      %167 = sbr.rel (%p164) target = $region36
    $region35: #{residual_forward.5} parent=5 // pred_region
      %s168 = ssub.s32 %s10, 1
      %s169 = smul.u32 8, %s15
      %p170 = scmp.lt.s32.totalorder %s169, 15
      %s171 = scalar_select %p170, %s169, 15
      %s172 = smul.addr %s171, 4
      %s173 = scalar_lea.vmem %s0, %s172
      %p174 = pneg %p36
      %p175 = pneg %p33
      %p176 = pneg %p57
      %p177 = pneg %p54
      %p178 = pneg %p78
      %p179 = pneg %p75
      %p180 = pneg %p99
      %p181 = pneg %p96
      %p182 = pneg %p125
      %p183 = pneg %p122
      %s184 = smul.u32 8, %s15
      %p185 = scmp.lt.s32.totalorder %s184, 15
      %s186 = scalar_select %p185, %s184, 15
      %s187 = smul.addr %s186, 4
      %s188 = scalar_lea.vmem %s4, %s187
      %s189 = smul.u32 8, %s15
      %p190 = scmp.lt.s32.totalorder %s189, 15
      %s191 = scalar_select %p190, %s189, 15
      %s192 = smul.addr %s191, 4
      %s193 = scalar_lea.vmem %s0, %s192
      %s194 = smul.u32 8, %s15
      %s195 = smul.u32 8, %s15
      %p196 = scmp.lt.s32.totalorder %s195, 15
      %s197 = scalar_select %p196, %s195, 15
      %s198 = smul.addr %s197, 4
      %s199 = scalar_lea.vmem %s4, %s198
      %s200 = smul.u32 8, %s15
      %v201 = vld [vmem:[%s3] sm:$0x3]
      %v202 = vld [vmem:[%s1] sm:$0x1]
      %v203 = vld [vmem:[%s1 + $0x1] sm:$0x1]
      %vm204 = vcmask 1040384
      %v205 = vsel %vm204, %v202, 0.0
      %v206 = vsel %vm204, %v203, 0.0
      %v207 = vadd.f32 %v205, %v206
      %v208 = vmul.f32 %v207, 0.0078125
      %v209 = vld [vmem:[%s2] sm:$0x1]
      %v210 = vld [vmem:[%s2 + $0x1] sm:$0x1]
      %v211 = vsel %vm204, %v209, 0.0
      %v212 = vsel %vm204, %v210, 0.0
      %v213 = vadd.f32 %v211, %v212
      %v214 = vmul.f32 %v213, 0.0078125
      %v215 = vmul.f32 %v208, %v208
      %v216 = vsub.f32 %v214, %v215
      %v217 = vadd.f32 %v216, 1e-05
      %v218 = vrsqrt.pop %v217
      %v219 = vmul.f32 %v218, %v201
      %v220 = vmul.f32 %v208, %v219
      %v222 = vrot.slane %v220, 7
      %v224 = vsub.f32 %v201, %v222
      %v225 = vld [vmem:[%s193] sm:$0xf]
      %v226 = vld [vmem:[%s193 + $0x4] sm:$0xf]
      %v227 = vld [vmem:[%s193 + $0x8] sm:$0xf]
      %v228 = vld [vmem:[%s193 + $0xc] sm:$0xf]
      %v229 = vld [vmem:[%s193 + $0x10] sm:$0xf]
      %v230 = vld [vmem:[%s193 + $0x14] sm:$0xf]
      %v231 = vld [vmem:[%s193 + $0x18] sm:$0xf]
      %v232 = vld [vmem:[%s193 + $0x1c] sm:$0xf]
      %v233 = vunpack.c.l.bf16 %v225
      %v234 = vunpack.c.l.bf16 %v226
      %v235 = vunpack.c.l.bf16 %v227
      %v236 = vunpack.c.l.bf16 %v228
      %v237 = vunpack.c.l.bf16 %v229
      %v238 = vunpack.c.l.bf16 %v230
      %v239 = vunpack.c.l.bf16 %v231
      %v240 = vunpack.c.l.bf16 %v232
      %v241 = vlaneseq
      %v242 = vshrl.u32 %v241, 7
      %v243 = vsub.s32 0, %v242
      %v244 = vrot.slane %v219, %v243
      %v245 = vmul.f32 %v233, %v244
      %v246 = vmul.f32 %v234, %v244
      %v247 = vmul.f32 %v235, %v244
      %v248 = vmul.f32 %v236, %v244
      %v249 = vmul.f32 %v237, %v244
      %v250 = vmul.f32 %v238, %v244
      %v251 = vmul.f32 %v239, %v244
      %v252 = vmul.f32 %v240, %v244
      %v253 = vlaneseq
      %v254 = vshrl.u32 %v253, 7
      %v255 = vsub.s32 1, %v254
      %v256 = vrot.slane %v224, %v255
      %v257 = vadd.f32 %v245, %v256
      %v258 = vadd.f32 %v246, %v256
      %v259 = vadd.f32 %v247, %v256
      %v260 = vadd.f32 %v248, %v256
      %v261 = vadd.f32 %v249, %v256
      %v262 = vadd.f32 %v250, %v256
      %v263 = vadd.f32 %v251, %v256
      %v264 = vadd.f32 %v252, %v256
      %v265 = vmax.f32 %v257, 0.0
      %v266 = vmax.f32 %v258, 0.0
      %v267 = vmax.f32 %v259, 0.0
      %v268 = vmax.f32 %v260, 0.0
      %v269 = vmax.f32 %v261, 0.0
      %v270 = vmax.f32 %v262, 0.0
      %v271 = vmax.f32 %v263, 0.0
      %v272 = vmax.f32 %v264, 0.0
      %v273 = vpack.c.bf16 %v266, %v265
      %v274 = vpack.c.bf16 %v268, %v267
      %v275 = vpack.c.bf16 %v270, %v269
      %v276 = vpack.c.bf16 %v272, %v271
      %v281 = vunpack.c.l.b16 %v273
      %v282 = vunpack.c.h.b16 %v273
      %v283 = vunpack.c.l.b16 %v274
      %v284 = vunpack.c.h.b16 %v274
      %v285 = vunpack.c.l.b16 %v275
      %v286 = vunpack.c.h.b16 %v275
      %v287 = vunpack.c.l.b16 %v276
      %v288 = vunpack.c.h.b16 %v276
      %v289 = vpack.c.b16 %v281, %v281
      %v290 = vpack.c.b16 %v282, %v282
      %v291 = vpack.c.b16 %v283, %v283
      %v292 = vpack.c.b16 %v284, %v284
      %v293 = vpack.c.b16 %v285, %v285
      %v294 = vpack.c.b16 %v286, %v286
      %v295 = vpack.c.b16 %v287, %v287
      %v296 = vpack.c.b16 %v288, %v288
      %305 = vst [vmem:[%s199] sm:$0xf] %v289
      %306 = vst [vmem:[%s199 + $0x4] sm:$0xf] %v290
      %307 = vst [vmem:[%s199 + $0x8] sm:$0xf] %v291
      %308 = vst [vmem:[%s199 + $0xc] sm:$0xf] %v292
      %309 = vst [vmem:[%s199 + $0x10] sm:$0xf] %v293
      %310 = vst [vmem:[%s199 + $0x14] sm:$0xf] %v294
      %311 = vst [vmem:[%s199 + $0x18] sm:$0xf] %v295
      %312 = vst [vmem:[%s199 + $0x1c] sm:$0xf] %v296
      %s313 = smul.u32 8, %s15
      %p314 = scmp.lt.s32.totalorder %s313, 15
      %s315 = scalar_select %p314, %s313, 15
      %s316 = smul.addr %s315, 4
      %s317 = scalar_lea.vmem %s4, %s316
      // Predicated region
      $region37: #{residual_forward.5} parent=35 // pred_check
        %p318 = pneg %p122
      $region38: #{residual_forward.5} parent=35 // pred_check_branch
        %320 = sbr.rel (%p318) target = $region40
      $region39: #{residual_forward.5} parent=35 // pred_region
        %s321 = smul.u32 8, %s15
      $region40: #{residual_forward.5} parent=35 // pred_fallthru
        _
    $region36: #{residual_forward.5} parent=5 // pred_fallthru
      _
    %p322 = scmp.le.s32.totalorder 2, %s10
    // Predicated region
    $region41: #{residual_forward.5} parent=5 // pred_check
      %p323 = pneg %p322
    $region42: #{residual_forward.5} parent=5 // pred_check_branch
      %325 = sbr.rel (%p323) target = $region44
    $region43: #{residual_forward.5} parent=5 // pred_region
      %s326 = ssub.s32 %s10, 2
      // Predicated region
      $region45: #{residual_forward.5} parent=43 // pred_check
        %p327 = pneg %p128
      $region46: #{residual_forward.5} parent=43 // pred_check_branch
        %329 = sbr.rel (%p327) target = $region48
      $region47: #{residual_forward.5} parent=43 // pred_region
        %s330 = smul.u32 8, %s16
        %p331 = scmp.lt.s32.totalorder %s330, 15
        %s332 = scalar_select %p331, %s330, 15
        %s333 = smul.addr %s332, 4
        %s334 = scalar_lea.vmem %s4, %s333
      $region48: #{residual_forward.5} parent=43 // pred_fallthru
        _
    $region44: #{residual_forward.5} parent=5 // pred_fallthru
      _
  $region6: #{residual_forward.5} parent=0 // loop_footer
    %s14 = sadd.s32 1, %s10
  $region7: #{residual_forward.5} parent=0 // loop_footer_branch
    %9 = sbr.rel target = $region3
  $region8: #{residual_forward.5} parent=0 // loop_exit
    _

// kernel: residual_forward.6
$region0: #{residual_forward.6}
  #allocation0 [shape = 'u32[]', space=smem, size = 0x4, offset = 0x4, fixed_abs, tag = 'smem constant byte address 0x4 - core index']
  #allocation1 [shape = 'u32[144,128]{1,0:T(1,128)}', space=vmem, size = 0x12000, scoped, tag = 'internal scratch']
  %s0 = inlined_call_operand.vmem [shape: bf16[128,72], index: 0, kind: input, shape index: {}]
  %s1 = inlined_call_operand.vmem [shape: bf16[72,128], index: 1, kind: input, shape index: {}]
  %s2 = inlined_call_operand.vmem [shape: bf16[128,128], index: 2, kind: output, shape index: {0}]
  %s3 = inlined_call_operand.vmem [shape: f32[2,1,128], index: 3, kind: output, shape index: {1}]
  %s4 = inlined_call_operand.vmem [shape: f32[2,1,128], index: 4, kind: output, shape index: {2}]
  %5 = xla_tuple %s2, %s3, %s4
  %s6 = sld [smem:[#allocation0]]
  $region61: #{residual_forward.6} parent=0
    _
  %s8 = ssub.s32 1, %s6
  %s9 = scalar_select 0, %s8, %s6
  loop: start=0, step=1, limit=4
  $region2: #{residual_forward.6} parent=0 // loop_pre_header
    _
  $region3: #{residual_forward.6} parent=0 // loop_header
    %s11 = sphi 0, %s15
    %p12 = scmp.ge.s32.totalorder %s11, 4
    %s18 = sphi 0, %s30
    %s19 = sphi 0, %s26
    %s20 = sphi 0, %s18
    %s21 = sphi 0, %s19
    %s22 = sphi 0, %s20
    %s23 = sphi 0, %s21
    %s35 = sphi 0, %s37
    %s38 = sphi 0, %s35
    %s39 = sphi 0, %s38
    %s55 = sphi 0, %s39
    %s59 = sphi 0, %s59
    %s61 = sphi 0, %s59
    %s62 = sphi 0, %s61
    %s76 = sphi 0, %s62
    %s84 = sphi 0, %s86
    %s87 = sphi 0, %s84
    %s88 = sphi 0, %s87
    %s104 = sphi 0, %s88
    %s110 = sphi 0, %s112
    %s113 = sphi 0, %s110
    %s114 = sphi 0, %s113
    %s130 = sphi 0, %s114
    %s136 = sphi 0, %s138
    %s139 = sphi 0, %s136
    %s140 = sphi 0, %s139
    %s156 = sphi 0, %s140
  $region4: #{residual_forward.6} parent=0 // loop_header_branch
    %14 = sbr.rel (%p12) target = $region8
  $region5: #{residual_forward.6} parent=0 // loop_body
    %s16 = ssub.s32 %s11, 1
    %s17 = ssub.s32 %s11, 2
    %s24 = sadd.s32 1, %s19
    %p25 = scmp.ge.s32.totalorder %s24, 1
    %s26 = scalar_select %p25, 0, %s24
    %s27 = sadd.s32 1, %s18
    %s28 = scalar_select %p25, %s27, %s18
    %p29 = scmp.ge.s32.totalorder %s28, 2
    %s30 = scalar_select %p29, 0, %s28
    %s31 = sadd.s32 %s18, %s19
    %s32 = sadd.s32 %s30, %s26
    %s33 = ssub.s32 %s31, %s32
    %p34 = scmp.eq.s32.totalorder %s33, 0
    %s36 = sadd.s32 %s35, 1
    %s37 = scalar_select %p34, %s35, %s36
    %p40 = pneg %p34
    %p41 = scmp.eq.s32.totalorder %s11, 1
    %p42 = por %p40, %p41
    %p43 = scmp.ne.s32.totalorder %s35, %s38
    %p44 = scmp.eq.s32.totalorder %s11, 0
    %p45 = por %p43, %p44
    %p46 = scmp.ne.s32.totalorder %s35, %s38
    %p47 = scmp.eq.s32.totalorder %s16, 1
    %p48 = por %p46, %p47
    %p49 = scmp.ne.s32.totalorder %s38, %s39
    %p50 = scmp.eq.s32.totalorder %s16, 0
    %p51 = por %p49, %p50
    %p52 = scmp.ne.s32.totalorder %s38, %s39
    %p53 = scmp.eq.s32.totalorder %s17, 1
    %p54 = por %p52, %p53
    %p56 = scmp.ne.s32.totalorder %s39, %s55
    %p57 = scmp.eq.s32.totalorder %s17, 0
    %p58 = por %p56, %p57
    %s60 = sadd.s32 %s59, 1
    %p63 = scmp.eq.s32.totalorder %s11, 1
    %p64 = scmp.ne.s32.totalorder %s59, %s61
    %p65 = scmp.eq.s32.totalorder %s11, 0
    %p66 = por %p64, %p65
    %p67 = scmp.ne.s32.totalorder %s59, %s61
    %p68 = scmp.eq.s32.totalorder %s16, 1
    %p69 = por %p67, %p68
    %p70 = scmp.ne.s32.totalorder %s61, %s62
    %p71 = scmp.eq.s32.totalorder %s16, 0
    %p72 = por %p70, %p71
    %p73 = scmp.ne.s32.totalorder %s61, %s62
    %p74 = scmp.eq.s32.totalorder %s17, 1
    %p75 = por %p73, %p74
    %p77 = scmp.ne.s32.totalorder %s62, %s76
    %p78 = scmp.eq.s32.totalorder %s17, 0
    %p79 = por %p77, %p78
    %s80 = sadd.s32 %s18, %s19
    %s81 = sadd.s32 %s30, %s26
    %s82 = ssub.s32 %s80, %s81
    %p83 = scmp.eq.s32.totalorder %s82, 0
    %s85 = sadd.s32 %s84, 1
    %s86 = scalar_select %p83, %s84, %s85
    %p89 = pneg %p83
    %p90 = scmp.eq.s32.totalorder %s11, 1
    %p91 = por %p89, %p90
    %p92 = scmp.ne.s32.totalorder %s84, %s87
    %p93 = scmp.eq.s32.totalorder %s11, 0
    %p94 = por %p92, %p93
    %p95 = scmp.ne.s32.totalorder %s84, %s87
    %p96 = scmp.eq.s32.totalorder %s16, 1
    %p97 = por %p95, %p96
    %p98 = scmp.ne.s32.totalorder %s87, %s88
    %p99 = scmp.eq.s32.totalorder %s16, 0
    %p100 = por %p98, %p99
    %p101 = scmp.ne.s32.totalorder %s87, %s88
    %p102 = scmp.eq.s32.totalorder %s17, 1
    %p103 = por %p101, %p102
    %p105 = scmp.ne.s32.totalorder %s88, %s104
    %p106 = scmp.eq.s32.totalorder %s17, 0
    %p107 = por %p105, %p106
    %s108 = ssub.s32 %s18, %s30
    %p109 = scmp.eq.s32.totalorder %s108, 0
    %s111 = sadd.s32 %s110, 1
    %s112 = scalar_select %p109, %s110, %s111
    %p115 = pneg %p109
    %p116 = scmp.eq.s32.totalorder %s11, 1
    %p117 = por %p115, %p116
    %p118 = scmp.ne.s32.totalorder %s110, %s113
    %p119 = scmp.eq.s32.totalorder %s11, 0
    %p120 = por %p118, %p119
    %p121 = scmp.ne.s32.totalorder %s110, %s113
    %p122 = scmp.eq.s32.totalorder %s16, 1
    %p123 = por %p121, %p122
    %p124 = scmp.ne.s32.totalorder %s113, %s114
    %p125 = scmp.eq.s32.totalorder %s16, 0
    %p126 = por %p124, %p125
    %p127 = scmp.ne.s32.totalorder %s113, %s114
    %p128 = scmp.eq.s32.totalorder %s17, 1
    %p129 = por %p127, %p128
    %p131 = scmp.ne.s32.totalorder %s114, %s130
    %p132 = scmp.eq.s32.totalorder %s17, 0
    %p133 = por %p131, %p132
    %s134 = ssub.s32 %s18, %s30
    %p135 = scmp.eq.s32.totalorder %s134, 0
    %s137 = sadd.s32 %s136, 1
    %s138 = scalar_select %p135, %s136, %s137
    %p141 = pneg %p135
    %p142 = scmp.eq.s32.totalorder %s11, 1
    %p143 = por %p141, %p142
    %p144 = scmp.ne.s32.totalorder %s136, %s139
    %p145 = scmp.eq.s32.totalorder %s11, 0
    %p146 = por %p144, %p145
    %p147 = scmp.ne.s32.totalorder %s136, %s139
    %p148 = scmp.eq.s32.totalorder %s16, 1
    %p149 = por %p147, %p148
    %p150 = scmp.ne.s32.totalorder %s139, %s140
    %p151 = scmp.eq.s32.totalorder %s16, 0
    %p152 = por %p150, %p151
    %p153 = scmp.ne.s32.totalorder %s139, %s140
    %p154 = scmp.eq.s32.totalorder %s17, 1
    %p155 = por %p153, %p154
    %p157 = scmp.ne.s32.totalorder %s140, %s156
    %p158 = scmp.eq.s32.totalorder %s17, 0
    %p159 = por %p157, %p158
    %p160 = scmp.le.s32.totalorder 1, %s11
    %p161 = scmp.lt.s32.totalorder %s11, 3
    %p162 = pnand %p160, %p161
    %p163 = pneg %p162
    // Predicated region
    $region9: #{residual_forward.6} parent=5 // pred_check
      _
    $region10: #{residual_forward.6} parent=5 // pred_check_branch
      %165 = sbr.rel (%p162) target = $region12
    $region11: #{residual_forward.6} parent=5 // pred_region
      %s166 = ssub.s32 %s11, 1
      // Predicated region
      $region13: #{residual_forward.6} parent=11 // pred_check
        %p167 = pneg %p72
      $region14: #{residual_forward.6} parent=11 // pred_check_branch
        %169 = sbr.rel (%p167) target = $region16
      $region15: #{residual_forward.6} parent=11 // pred_region
        _
      $region16: #{residual_forward.6} parent=11 // pred_fallthru
        _
    $region12: #{residual_forward.6} parent=5 // pred_fallthru
      _
    %p170 = scmp.lt.s32.totalorder %s11, 2
    // Predicated region
    $region17: #{residual_forward.6} parent=5 // pred_check
      %p171 = pneg %p170
    $region18: #{residual_forward.6} parent=5 // pred_check_branch
      %173 = sbr.rel (%p171) target = $region20
    $region19: #{residual_forward.6} parent=5 // pred_region
      // Predicated region
      $region21: #{residual_forward.6} parent=19 // pred_check
        %p174 = pneg %p45
      $region22: #{residual_forward.6} parent=19 // pred_check_branch
        %176 = sbr.rel (%p174) target = $region24
      $region23: #{residual_forward.6} parent=19 // pred_region
        %s177 = sadd.s32 %s18, %s19
        %s178 = smul.u32 8, %s177
        %p179 = scmp.lt.s32.totalorder %s178, 15
        %s180 = scalar_select %p179, %s178, 15
        %s181 = smul.addr %s180, 4
        %s182 = scalar_lea.vmem %s0, %s181
        %s183 = sadd.s32 %s18, %s19
        %s184 = smul.u32 8, %s183
      $region24: #{residual_forward.6} parent=19 // pred_fallthru
        _
    $region20: #{residual_forward.6} parent=5 // pred_fallthru
      _
    %p185 = scmp.le.s32.totalorder 1, %s11
    %p186 = scmp.lt.s32.totalorder %s11, 3
    %p187 = pnand %p185, %p186
    %p188 = pneg %p187
    // Predicated region
    $region25: #{residual_forward.6} parent=5 // pred_check
      _
    $region26: #{residual_forward.6} parent=5 // pred_check_branch
      %190 = sbr.rel (%p187) target = $region28
    $region27: #{residual_forward.6} parent=5 // pred_region
      %s191 = ssub.s32 %s11, 1
      %s192 = sadd.s32 %s20, %s21
      %s193 = smul.u32 8, %s192
      %p194 = scmp.lt.s32.totalorder %s193, 15
      %s195 = scalar_select %p194, %s193, 15
      %s196 = smul.addr %s195, 4
      %s197 = scalar_lea.vmem %s0, %s196
      %p198 = pneg %p51
      %p199 = pneg %p48
      %p200 = pneg %p72
      %p201 = pneg %p69
      %p202 = pneg %p100
      %p203 = pneg %p97
      %s204 = sadd.s32 %s20, %s21
      %s205 = smul.u32 8, %s204
      %p206 = scmp.lt.s32.totalorder %s205, 15
      %s207 = scalar_select %p206, %s205, 15
      %s208 = smul.addr %s207, 4
      %s209 = scalar_lea.vmem %s2, %s208
      %p210 = pneg %p126
      %p211 = pneg %p123
      %p212 = scmp.lt.s32.totalorder %s20, 1
      %s213 = scalar_select %p212, %s20, 1
      %s214 = scalar_lea.vmem %s3, %s213
      %p215 = pneg %p152
      %p216 = pneg %p149
      %p217 = scmp.lt.s32.totalorder %s20, 1
      %s218 = scalar_select %p217, %s20, 1
      %s219 = scalar_lea.vmem %s4, %s218
      %s220 = sadd.s32 %s20, %s21
      %s221 = smul.u32 8, %s220
      %p222 = scmp.lt.s32.totalorder %s221, 15
      %s223 = scalar_select %p222, %s221, 15
      %s224 = smul.addr %s223, 4
      %s225 = scalar_lea.vmem %s0, %s224
      %s226 = sadd.s32 %s20, %s21
      %s227 = smul.u32 8, %s226
      %s228 = sadd.s32 %s20, %s21
      %s229 = smul.u32 8, %s228
      %p230 = scmp.lt.s32.totalorder %s229, 15
      %s231 = scalar_select %p230, %s229, 15
      %s232 = smul.addr %s231, 4
      %s233 = scalar_lea.vmem %s2, %s232
      %s234 = sadd.s32 %s20, %s21
      %s235 = smul.u32 8, %s234
      %p236 = scmp.lt.s32.totalorder %s20, 1
      %s237 = scalar_select %p236, %s20, 1
      %s238 = scalar_lea.vmem %s3, %s237
      %p239 = scmp.lt.s32.totalorder %s20, 1
      %s240 = scalar_select %p239, %s20, 1
      %s241 = scalar_lea.vmem %s4, %s240
      %p243 = scmp.eq.s32.totalorder %s21, 0
      // Predicated region
      $region29: #{residual_forward.6} parent=27 // pred_check
        %p244 = pneg %p243
      $region30: #{residual_forward.6} parent=27 // pred_check_branch
        %246 = sbr.rel (%p244) target = $region32
      $region31: #{residual_forward.6} parent=27 // pred_region
        %247 = vst [vmem:[%s238] sm:$0x1] 0.0
        %248 = vst [vmem:[%s241] sm:$0x1] 0.0
      $region32: #{residual_forward.6} parent=27 // pred_fallthru
        _
      %v249 = vld [vmem:[%s225] sm:$0xf]
      %v250 = vld [vmem:[%s225 + $0x4] sm:$0xf]
      %v251 = vld [vmem:[%s225 + $0x8] sm:$0xf]
      %v252 = vld [vmem:[%s225 + $0xc] sm:$0xf]
      %v253 = vld [vmem:[%s225 + $0x10] sm:$0xf]
      %v254 = vld [vmem:[%s225 + $0x14] sm:$0xf]
      %v255 = vld [vmem:[%s225 + $0x18] sm:$0xf]
      %v256 = vld [vmem:[%s225 + $0x1c] sm:$0xf]
      %v257 = vld [vmem:[%s1] sm:$0xf]
      %v258 = vld [vmem:[%s1 + $0x4] sm:$0xf]
      %v259 = vld [vmem:[%s1 + $0x8] sm:$0xf]
      %v260 = vld [vmem:[%s1 + $0xc] sm:$0xf]
      %v261 = vld [vmem:[%s1 + $0x10] sm:$0xf]
      %v262 = vld [vmem:[%s1 + $0x14] sm:$0xf]
      %v263 = vld [vmem:[%s1 + $0x18] sm:$0xf]
      %v264 = vld [vmem:[%s1 + $0x1c] sm:$0xf]
      %v265 = vld [vmem:[%s1 + $0x20] sm:$0xf]
      %v274 = vunpack.c.l.b16 %v249
      %v275 = vunpack.c.l.b16 %v250
      %v276 = vunpack.c.l.b16 %v251
      %v277 = vunpack.c.l.b16 %v252
      %v278 = vunpack.c.l.b16 %v253
      %v279 = vunpack.c.l.b16 %v254
      %v280 = vunpack.c.l.b16 %v255
      %v281 = vunpack.c.l.b16 %v256
      %v282 = vpack.c.b16 %v275, %v274
      %v283 = vpack.c.b16 %v277, %v276
      %v284 = vpack.c.b16 %v279, %v278
      %v285 = vpack.c.b16 %v281, %v280
      %v295 = vunpack.c.l.b16 %v257
      %v296 = vunpack.c.l.b16 %v258
      %v297 = vunpack.c.l.b16 %v259
      %v298 = vunpack.c.l.b16 %v260
      %v299 = vunpack.c.l.b16 %v261
      %v300 = vunpack.c.l.b16 %v262
      %v301 = vunpack.c.l.b16 %v263
      %v302 = vunpack.c.l.b16 %v264
      %v303 = vunpack.c.l.b16 %v265
      %v304 = vpack.c.b16 %v296, %v295
      %v305 = vpack.c.b16 %v298, %v297
      %v306 = vpack.c.b16 %v300, %v299
      %v307 = vpack.c.b16 %v302, %v301
      %v308 = vpack.c.b16 %v303, %v303
      %vm313 = vcmask 588800
      %v315 = vsel %vm313, %v282, 0
      %v318 = vsel %vm313, %v283, 0
      %v321 = vsel %vm313, %v284, 0
      %v324 = vsel %vm313, %v285, 0
      %vm326 = vcmask 1043456
      %v328 = vsel %vm326, %v308, 0
      %330 = vmatprep.subr.bf16.mxu0 0
      %331 = vmatpush1.bf16.msra.mxu0 %v304
      %332 = vmatprep.subr.bf16.mxu0 0
      %333 = vmatpush1.bf16.msra.mxu0 %v305
      %334 = vmatprep.subr.bf16.mxu0 0
      %335 = vmatpush1.bf16.msra.mxu0 %v306
      %336 = vmatprep.subr.bf16.mxu0 0
      %337 = vmatpush1.bf16.msra.mxu0 %v307
      %338 = vmatprep.subr.bf16.mxu0 0
      %339 = vmatpush1.bf16.msra.mxu0 %v328
      %340 = vmatprep.subr.bf16.mxu0 0
      %341 = vmatpush1.bf16.msra.mxu0 0
      %342 = vmatprep.subr.bf16.mxu0 0
      %343 = vmatpush1.bf16.msra.mxu0 0
      %344 = vmatprep.subr.bf16.mxu0 0
      %345 = vmatpush1.bf16.msra.mxu0 0
      %346 = vmatprep.subr.bf16.mxu0 0
      %347 = vmatpush1.bf16.msra.mxu0 0
      %348 = vmatprep.subr.bf16.mxu0 0
      %349 = vmatpush1.bf16.msra.mxu0 0
      %350 = vmatprep.subr.bf16.mxu0 0
      %351 = vmatpush1.bf16.msra.mxu0 0
      %352 = vmatprep.subr.bf16.mxu0 0
      %353 = vmatpush1.bf16.msra.mxu0 0
      %354 = vmatprep.subr.bf16.mxu0 0
      %355 = vmatpush1.bf16.msra.mxu0 0
      %356 = vmatprep.subr.bf16.mxu0 0
      %357 = vmatpush1.bf16.msra.mxu0 0
      %358 = vmatprep.subr.bf16.mxu0 0
      %359 = vmatpush1.bf16.msra.mxu0 0
      %360 = vmatprep.subr.bf16.mxu0 0
      %361 = vmatpush1.bf16.msra.mxu0 0
      %362 = vmatprep.mubr.bf16.mxu0 0
      %363 = vmatmul.mubr.bf16.gmra.mrb[0].mxu0 %v315
      %v364 = vpop.f32.mrb[0].mxu0
      %v365 = vadd.f32 0.0, %v364
      %v366 = vpop.f32.mrb[0].mxu0
      %v367 = vpop.f32.mrb[0].mxu0
      %v368 = vadd.f32 0.0, %v367
      %v369 = vpop.f32.mrb[0].mxu0
      %370 = vmatprep.mubr.bf16.mxu0 0
      %371 = vmatmul.mubr.bf16.gmra.mrb[0].mxu0 %v318
      %v372 = vpop.f32.mrb[0].mxu0
      %v373 = vadd.f32 0.0, %v372
      %v374 = vpop.f32.mrb[0].mxu0
      %v375 = vpop.f32.mrb[0].mxu0
      %v376 = vadd.f32 0.0, %v375
      %v377 = vpop.f32.mrb[0].mxu0
      %378 = vmatprep.mubr.bf16.mxu0 0
      %379 = vmatmul.mubr.bf16.gmra.mrb[0].mxu0 %v321
      %v380 = vpop.f32.mrb[0].mxu0
      %v381 = vadd.f32 0.0, %v380
      %v382 = vpop.f32.mrb[0].mxu0
      %v383 = vpop.f32.mrb[0].mxu0
      %v384 = vadd.f32 0.0, %v383
      %v385 = vpop.f32.mrb[0].mxu0
      %386 = vmatprep.mubr.bf16.mxu0 0
      %387 = vmatmul.mubr.bf16.gmra.mrb[0].mxu0 %v324
      %v388 = vpop.f32.mrb[0].mxu0
      %v389 = vadd.f32 0.0, %v388
      %v390 = vpop.f32.mrb[0].mxu0
      %v391 = vpop.f32.mrb[0].mxu0
      %v392 = vadd.f32 0.0, %v391
      %v393 = vpop.f32.mrb[0].mxu0
      %394 = vdwg.mxu0
      %v395 = vpack.c.bf16 %v368, %v365
      %v396 = vpack.c.bf16 %v376, %v373
      %v397 = vpack.c.bf16 %v384, %v381
      %v398 = vpack.c.bf16 %v392, %v389
      %v403 = vunpack.c.l.b16 %v395
      %v404 = vunpack.c.h.b16 %v395
      %v405 = vunpack.c.l.b16 %v396
      %v406 = vunpack.c.h.b16 %v396
      %v407 = vunpack.c.l.b16 %v397
      %v408 = vunpack.c.h.b16 %v397
      %v409 = vunpack.c.l.b16 %v398
      %v410 = vunpack.c.h.b16 %v398
      %v411 = vpack.c.b16 %v403, %v403
      %v412 = vpack.c.b16 %v404, %v404
      %v413 = vpack.c.b16 %v405, %v405
      %v414 = vpack.c.b16 %v406, %v406
      %v415 = vpack.c.b16 %v407, %v407
      %v416 = vpack.c.b16 %v408, %v408
      %v417 = vpack.c.b16 %v409, %v409
      %v418 = vpack.c.b16 %v410, %v410
      %427 = vst [vmem:[%s233] sm:$0xf] %v411
      %428 = vst [vmem:[%s233 + $0x4] sm:$0xf] %v412
      %429 = vst [vmem:[%s233 + $0x8] sm:$0xf] %v413
      %430 = vst [vmem:[%s233 + $0xc] sm:$0xf] %v414
      %431 = vst [vmem:[%s233 + $0x10] sm:$0xf] %v415
      %432 = vst [vmem:[%s233 + $0x14] sm:$0xf] %v416
      %433 = vst [vmem:[%s233 + $0x18] sm:$0xf] %v417
      %434 = vst [vmem:[%s233 + $0x1c] sm:$0xf] %v418
      %v435 = vld [vmem:[%s238] sm:$0x1]
      %v436 = vadd.f32 %v365, %v368
      %v437 = vadd.f32 %v436, %v373
      %v438 = vadd.f32 %v437, %v376
      %v439 = vadd.f32 %v438, %v381
      %v440 = vadd.f32 %v439, %v384
      %v441 = vadd.f32 %v440, %v389
      %v442 = vadd.f32 %v441, %v392
      %v443 = vrot.slane %v442, 4
      %v444 = vadd.f32 %v442, %v443
      %v445 = vrot.slane %v444, 2
      %v446 = vadd.f32 %v444, %v445
      %v447 = vrot.slane %v446, 1
      %v448 = vadd.f32 %v446, %v447
      %v449 = vadd.f32 %v435, %v448
      %450 = vst [vmem:[%s238] sm:$0x1] %v449
      %v451 = vld [vmem:[%s241] sm:$0x1]
      %v452 = vmul.f32 %v365, %v365
      %v453 = vmul.f32 %v368, %v368
      %v454 = vmul.f32 %v373, %v373
      %v455 = vmul.f32 %v376, %v376
      %v456 = vmul.f32 %v381, %v381
      %v457 = vmul.f32 %v384, %v384
      %v458 = vmul.f32 %v389, %v389
      %v459 = vmul.f32 %v392, %v392
      %v460 = vadd.f32 %v452, %v453
      %v461 = vadd.f32 %v460, %v454
      %v462 = vadd.f32 %v461, %v455
      %v463 = vadd.f32 %v462, %v456
      %v464 = vadd.f32 %v463, %v457
      %v465 = vadd.f32 %v464, %v458
      %v466 = vadd.f32 %v465, %v459
      %v467 = vrot.slane %v466, 4
      %v468 = vadd.f32 %v466, %v467
      %v469 = vrot.slane %v468, 2
      %v470 = vadd.f32 %v468, %v469
      %v471 = vrot.slane %v470, 1
      %v472 = vadd.f32 %v470, %v471
      %v473 = vadd.f32 %v451, %v472
      %474 = vst [vmem:[%s241] sm:$0x1] %v473
      %s475 = sadd.s32 %s20, %s21
      %s476 = smul.u32 8, %s475
      %p477 = scmp.lt.s32.totalorder %s476, 15
      %s478 = scalar_select %p477, %s476, 15
      %s479 = smul.addr %s478, 4
      %s480 = scalar_lea.vmem %s2, %s479
      %p481 = scmp.lt.s32.totalorder %s20, 1
      %s482 = scalar_select %p481, %s20, 1
      %s483 = scalar_lea.vmem %s3, %s482
      %p484 = scmp.lt.s32.totalorder %s20, 1
      %s485 = scalar_select %p484, %s20, 1
      %s486 = scalar_lea.vmem %s4, %s485
      // Predicated region
      $region33: #{residual_forward.6} parent=27 // pred_check
        %p487 = pneg %p97
      $region34: #{residual_forward.6} parent=27 // pred_check_branch
        %489 = sbr.rel (%p487) target = $region36
      $region35: #{residual_forward.6} parent=27 // pred_region
        %s490 = sadd.s32 %s20, %s21
        %s491 = smul.u32 8, %s490
      $region36: #{residual_forward.6} parent=27 // pred_fallthru
        _
      // Predicated region
      $region37: #{residual_forward.6} parent=27 // pred_check
        %p492 = pneg %p123
      $region38: #{residual_forward.6} parent=27 // pred_check_branch
        %494 = sbr.rel (%p492) target = $region40
      $region39: #{residual_forward.6} parent=27 // pred_region
        _
      $region40: #{residual_forward.6} parent=27 // pred_fallthru
        _
      // Predicated region
      $region41: #{residual_forward.6} parent=27 // pred_check
        %p495 = pneg %p149
      $region42: #{residual_forward.6} parent=27 // pred_check_branch
        %497 = sbr.rel (%p495) target = $region44
      $region43: #{residual_forward.6} parent=27 // pred_region
        _
      $region44: #{residual_forward.6} parent=27 // pred_fallthru
        _
    $region28: #{residual_forward.6} parent=5 // pred_fallthru
      _
    %p498 = scmp.le.s32.totalorder 2, %s11
    // Predicated region
    $region45: #{residual_forward.6} parent=5 // pred_check
      %p499 = pneg %p498
    $region46: #{residual_forward.6} parent=5 // pred_check_branch
      %501 = sbr.rel (%p499) target = $region48
    $region47: #{residual_forward.6} parent=5 // pred_region
      %s502 = ssub.s32 %s11, 2
      // Predicated region
      $region49: #{residual_forward.6} parent=47 // pred_check
        %p503 = pneg %p103
      $region50: #{residual_forward.6} parent=47 // pred_check_branch
        %505 = sbr.rel (%p503) target = $region52
      $region51: #{residual_forward.6} parent=47 // pred_region
        %s506 = sadd.s32 %s22, %s23
        %s507 = smul.u32 8, %s506
        %p508 = scmp.lt.s32.totalorder %s507, 15
        %s509 = scalar_select %p508, %s507, 15
        %s510 = smul.addr %s509, 4
        %s511 = scalar_lea.vmem %s2, %s510
      $region52: #{residual_forward.6} parent=47 // pred_fallthru
        _
      // Predicated region
      $region53: #{residual_forward.6} parent=47 // pred_check
        %p512 = pneg %p129
      $region54: #{residual_forward.6} parent=47 // pred_check_branch
        %514 = sbr.rel (%p512) target = $region56
      $region55: #{residual_forward.6} parent=47 // pred_region
        %p515 = scmp.lt.s32.totalorder %s22, 1
        %s516 = scalar_select %p515, %s22, 1
        %s517 = scalar_lea.vmem %s3, %s516
      $region56: #{residual_forward.6} parent=47 // pred_fallthru
        _
      // Predicated region
      $region57: #{residual_forward.6} parent=47 // pred_check
        %p518 = pneg %p155
      $region58: #{residual_forward.6} parent=47 // pred_check_branch
        %520 = sbr.rel (%p518) target = $region60
      $region59: #{residual_forward.6} parent=47 // pred_region
        %p521 = scmp.lt.s32.totalorder %s22, 1
        %s522 = scalar_select %p521, %s22, 1
        %s523 = scalar_lea.vmem %s4, %s522
      $region60: #{residual_forward.6} parent=47 // pred_fallthru
        _
    $region48: #{residual_forward.6} parent=5 // pred_fallthru
      _
  $region6: #{residual_forward.6} parent=0 // loop_footer
    %s15 = sadd.s32 1, %s11
  $region7: #{residual_forward.6} parent=0 // loop_footer_branch
    %10 = sbr.rel target = $region3
  $region8: #{residual_forward.6} parent=0 // loop_exit
    _

// kernel: residual_forward.7
$region0: #{residual_forward.7}
  #allocation0 [shape = 'u32[]', space=smem, size = 0x4, offset = 0x4, fixed_abs, tag = 'smem constant byte address 0x4 - core index']
  #allocation1 [shape = 'u32[144,128]{1,0:T(1,128)}', space=vmem, size = 0x12000, scoped, tag = 'internal scratch']
  %s0 = inlined_call_operand.vmem [shape: bf16[128,128], index: 0, kind: input, shape index: {}]
  %s1 = inlined_call_operand.vmem [shape: f32[2,1,128], index: 1, kind: input, shape index: {}]
  %s2 = inlined_call_operand.vmem [shape: f32[2,1,128], index: 2, kind: input, shape index: {}]
  %s3 = inlined_call_operand.vmem [shape: f32[3,128], index: 3, kind: input, shape index: {}]
  %s4 = inlined_call_operand.vmem [shape: bf16[128,4], index: 4, kind: input, shape index: {}]
  %s5 = inlined_call_operand.vmem [shape: bf16[4,128], index: 5, kind: input, shape index: {}]
  %s6 = inlined_call_operand.vmem [shape: f32[128,128], index: 6, kind: output, shape index: {}]
  %s7 = sld [smem:[#allocation0]]
  $region57: #{residual_forward.7} parent=0
    _
  %s9 = ssub.s32 1, %s7
  %s10 = scalar_select 0, %s9, %s7
  loop: start=0, step=1, limit=4
  $region2: #{residual_forward.7} parent=0 // loop_pre_header
    _
  $region3: #{residual_forward.7} parent=0 // loop_header
    %s12 = sphi 0, %s16
    %p13 = scmp.ge.s32.totalorder %s12, 4
    %s22 = sphi 0, %s24
    %s25 = sphi 0, %s22
    %s26 = sphi 0, %s25
    %s42 = sphi 0, %s26
    %s46 = sphi 0, %s46
    %s48 = sphi 0, %s46
    %s49 = sphi 0, %s48
    %s63 = sphi 0, %s49
    %s67 = sphi 0, %s67
    %s69 = sphi 0, %s67
    %s70 = sphi 0, %s69
    %s84 = sphi 0, %s70
    %s88 = sphi 0, %s88
    %s90 = sphi 0, %s88
    %s91 = sphi 0, %s90
    %s105 = sphi 0, %s91
    %s111 = sphi 0, %s113
    %s114 = sphi 0, %s111
    %s115 = sphi 0, %s114
    %s131 = sphi 0, %s115
    %s135 = sphi 0, %s135
    %s137 = sphi 0, %s135
    %s138 = sphi 0, %s137
    %s152 = sphi 0, %s138
    %s158 = sphi 0, %s160
    %s161 = sphi 0, %s158
    %s162 = sphi 0, %s161
    %s178 = sphi 0, %s162
  $region4: #{residual_forward.7} parent=0 // loop_header_branch
    %15 = sbr.rel (%p13) target = $region8
  $region5: #{residual_forward.7} parent=0 // loop_body
    %s17 = ssub.s32 %s12, 1
    %s18 = ssub.s32 %s12, 2
    %s19 = sadd.s32 %s12, 1
    %s20 = ssub.s32 %s12, %s19
    %p21 = scmp.eq.s32.totalorder %s20, 0
    %s23 = sadd.s32 %s22, 1
    %s24 = scalar_select %p21, %s22, %s23
    %p27 = pneg %p21
    %p28 = scmp.eq.s32.totalorder %s12, 1
    %p29 = por %p27, %p28
    %p30 = scmp.ne.s32.totalorder %s22, %s25
    %p31 = scmp.eq.s32.totalorder %s12, 0
    %p32 = por %p30, %p31
    %p33 = scmp.ne.s32.totalorder %s22, %s25
    %p34 = scmp.eq.s32.totalorder %s17, 1
    %p35 = por %p33, %p34
    %p36 = scmp.ne.s32.totalorder %s25, %s26
    %p37 = scmp.eq.s32.totalorder %s17, 0
    %p38 = por %p36, %p37
    %p39 = scmp.ne.s32.totalorder %s25, %s26
    %p40 = scmp.eq.s32.totalorder %s18, 1
    %p41 = por %p39, %p40
    %p43 = scmp.ne.s32.totalorder %s26, %s42
    %p44 = scmp.eq.s32.totalorder %s18, 0
    %p45 = por %p43, %p44
    %s47 = sadd.s32 %s46, 1
    %p50 = scmp.eq.s32.totalorder %s12, 1
    %p51 = scmp.ne.s32.totalorder %s46, %s48
    %p52 = scmp.eq.s32.totalorder %s12, 0
    %p53 = por %p51, %p52
    %p54 = scmp.ne.s32.totalorder %s46, %s48
    %p55 = scmp.eq.s32.totalorder %s17, 1
    %p56 = por %p54, %p55
    %p57 = scmp.ne.s32.totalorder %s48, %s49
    %p58 = scmp.eq.s32.totalorder %s17, 0
    %p59 = por %p57, %p58
    %p60 = scmp.ne.s32.totalorder %s48, %s49
    %p61 = scmp.eq.s32.totalorder %s18, 1
    %p62 = por %p60, %p61
    %p64 = scmp.ne.s32.totalorder %s49, %s63
    %p65 = scmp.eq.s32.totalorder %s18, 0
    %p66 = por %p64, %p65
    %s68 = sadd.s32 %s67, 1
    %p71 = scmp.eq.s32.totalorder %s12, 1
    %p72 = scmp.ne.s32.totalorder %s67, %s69
    %p73 = scmp.eq.s32.totalorder %s12, 0
    %p74 = por %p72, %p73
    %p75 = scmp.ne.s32.totalorder %s67, %s69
    %p76 = scmp.eq.s32.totalorder %s17, 1
    %p77 = por %p75, %p76
    %p78 = scmp.ne.s32.totalorder %s69, %s70
    %p79 = scmp.eq.s32.totalorder %s17, 0
    %p80 = por %p78, %p79
    %p81 = scmp.ne.s32.totalorder %s69, %s70
    %p82 = scmp.eq.s32.totalorder %s18, 1
    %p83 = por %p81, %p82
    %p85 = scmp.ne.s32.totalorder %s70, %s84
    %p86 = scmp.eq.s32.totalorder %s18, 0
    %p87 = por %p85, %p86
    %s89 = sadd.s32 %s88, 1
    %p92 = scmp.eq.s32.totalorder %s12, 1
    %p93 = scmp.ne.s32.totalorder %s88, %s90
    %p94 = scmp.eq.s32.totalorder %s12, 0
    %p95 = por %p93, %p94
    %p96 = scmp.ne.s32.totalorder %s88, %s90
    %p97 = scmp.eq.s32.totalorder %s17, 1
    %p98 = por %p96, %p97
    %p99 = scmp.ne.s32.totalorder %s90, %s91
    %p100 = scmp.eq.s32.totalorder %s17, 0
    %p101 = por %p99, %p100
    %p102 = scmp.ne.s32.totalorder %s90, %s91
    %p103 = scmp.eq.s32.totalorder %s18, 1
    %p104 = por %p102, %p103
    %p106 = scmp.ne.s32.totalorder %s91, %s105
    %p107 = scmp.eq.s32.totalorder %s18, 0
    %p108 = por %p106, %p107
    %s109 = ssub.s32 %s12, %s19
    %p110 = scmp.eq.s32.totalorder %s109, 0
    %s112 = sadd.s32 %s111, 1
    %s113 = scalar_select %p110, %s111, %s112
    %p116 = pneg %p110
    %p117 = scmp.eq.s32.totalorder %s12, 1
    %p118 = por %p116, %p117
    %p119 = scmp.ne.s32.totalorder %s111, %s114
    %p120 = scmp.eq.s32.totalorder %s12, 0
    %p121 = por %p119, %p120
    %p122 = scmp.ne.s32.totalorder %s111, %s114
    %p123 = scmp.eq.s32.totalorder %s17, 1
    %p124 = por %p122, %p123
    %p125 = scmp.ne.s32.totalorder %s114, %s115
    %p126 = scmp.eq.s32.totalorder %s17, 0
    %p127 = por %p125, %p126
    %p128 = scmp.ne.s32.totalorder %s114, %s115
    %p129 = scmp.eq.s32.totalorder %s18, 1
    %p130 = por %p128, %p129
    %p132 = scmp.ne.s32.totalorder %s115, %s131
    %p133 = scmp.eq.s32.totalorder %s18, 0
    %p134 = por %p132, %p133
    %s136 = sadd.s32 %s135, 1
    %p139 = scmp.eq.s32.totalorder %s12, 1
    %p140 = scmp.ne.s32.totalorder %s135, %s137
    %p141 = scmp.eq.s32.totalorder %s12, 0
    %p142 = por %p140, %p141
    %p143 = scmp.ne.s32.totalorder %s135, %s137
    %p144 = scmp.eq.s32.totalorder %s17, 1
    %p145 = por %p143, %p144
    %p146 = scmp.ne.s32.totalorder %s137, %s138
    %p147 = scmp.eq.s32.totalorder %s17, 0
    %p148 = por %p146, %p147
    %p149 = scmp.ne.s32.totalorder %s137, %s138
    %p150 = scmp.eq.s32.totalorder %s18, 1
    %p151 = por %p149, %p150
    %p153 = scmp.ne.s32.totalorder %s138, %s152
    %p154 = scmp.eq.s32.totalorder %s18, 0
    %p155 = por %p153, %p154
    %s156 = ssub.s32 %s12, %s19
    %p157 = scmp.eq.s32.totalorder %s156, 0
    %s159 = sadd.s32 %s158, 1
    %s160 = scalar_select %p157, %s158, %s159
    %p163 = pneg %p157
    %p164 = scmp.eq.s32.totalorder %s12, 1
    %p165 = por %p163, %p164
    %p166 = scmp.ne.s32.totalorder %s158, %s161
    %p167 = scmp.eq.s32.totalorder %s12, 0
    %p168 = por %p166, %p167
    %p169 = scmp.ne.s32.totalorder %s158, %s161
    %p170 = scmp.eq.s32.totalorder %s17, 1
    %p171 = por %p169, %p170
    %p172 = scmp.ne.s32.totalorder %s161, %s162
    %p173 = scmp.eq.s32.totalorder %s17, 0
    %p174 = por %p172, %p173
    %p175 = scmp.ne.s32.totalorder %s161, %s162
    %p176 = scmp.eq.s32.totalorder %s18, 1
    %p177 = por %p175, %p176
    %p179 = scmp.ne.s32.totalorder %s162, %s178
    %p180 = scmp.eq.s32.totalorder %s18, 0
    %p181 = por %p179, %p180
    %p182 = scmp.le.s32.totalorder 1, %s12
    %p183 = scmp.lt.s32.totalorder %s12, 3
    %p184 = pnand %p182, %p183
    %p185 = pneg %p184
    // Predicated region
    $region9: #{residual_forward.7} parent=5 // pred_check
      _
    $region10: #{residual_forward.7} parent=5 // pred_check_branch
      %187 = sbr.rel (%p184) target = $region12
    $region11: #{residual_forward.7} parent=5 // pred_region
      %s188 = ssub.s32 %s12, 1
      // Predicated region
      $region13: #{residual_forward.7} parent=11 // pred_check
        %p189 = pneg %p59
      $region14: #{residual_forward.7} parent=11 // pred_check_branch
        %191 = sbr.rel (%p189) target = $region16
      $region15: #{residual_forward.7} parent=11 // pred_region
        _
      $region16: #{residual_forward.7} parent=11 // pred_fallthru
        _
      // Predicated region
      $region17: #{residual_forward.7} parent=11 // pred_check
        %p192 = pneg %p80
      $region18: #{residual_forward.7} parent=11 // pred_check_branch
        %194 = sbr.rel (%p192) target = $region20
      $region19: #{residual_forward.7} parent=11 // pred_region
        _
      $region20: #{residual_forward.7} parent=11 // pred_fallthru
        _
      // Predicated region
      $region21: #{residual_forward.7} parent=11 // pred_check
        %p195 = pneg %p101
      $region22: #{residual_forward.7} parent=11 // pred_check_branch
        %197 = sbr.rel (%p195) target = $region24
      $region23: #{residual_forward.7} parent=11 // pred_region
        _
      $region24: #{residual_forward.7} parent=11 // pred_fallthru
        _
      // Predicated region
      $region25: #{residual_forward.7} parent=11 // pred_check
        %p198 = pneg %p148
      $region26: #{residual_forward.7} parent=11 // pred_check_branch
        %200 = sbr.rel (%p198) target = $region28
      $region27: #{residual_forward.7} parent=11 // pred_region
        _
      $region28: #{residual_forward.7} parent=11 // pred_fallthru
        _
    $region12: #{residual_forward.7} parent=5 // pred_fallthru
      _
    %p201 = scmp.lt.s32.totalorder %s12, 2
    // Predicated region
    $region29: #{residual_forward.7} parent=5 // pred_check
      %p202 = pneg %p201
    $region30: #{residual_forward.7} parent=5 // pred_check_branch
      %204 = sbr.rel (%p202) target = $region32
    $region31: #{residual_forward.7} parent=5 // pred_region
      // Predicated region
      $region33: #{residual_forward.7} parent=31 // pred_check
        %p205 = pneg %p32
      $region34: #{residual_forward.7} parent=31 // pred_check_branch
        %207 = sbr.rel (%p205) target = $region36
      $region35: #{residual_forward.7} parent=31 // pred_region
        %s208 = smul.u32 8, %s12
        %p209 = scmp.lt.s32.totalorder %s208, 15
        %s210 = scalar_select %p209, %s208, 15
        %s211 = smul.addr %s210, 4
        %s212 = scalar_lea.vmem %s0, %s211
        %s213 = smul.u32 8, %s12
      $region36: #{residual_forward.7} parent=31 // pred_fallthru
        _
      // Predicated region
      $region37: #{residual_forward.7} parent=31 // pred_check
        %p214 = pneg %p121
      $region38: #{residual_forward.7} parent=31 // pred_check_branch
        %216 = sbr.rel (%p214) target = $region40
      $region39: #{residual_forward.7} parent=31 // pred_region
        %s217 = smul.u32 8, %s12
        %p218 = scmp.lt.s32.totalorder %s217, 15
        %s219 = scalar_select %p218, %s217, 15
        %s220 = smul.addr %s219, 4
        %s221 = scalar_lea.vmem %s4, %s220
        %s222 = smul.u32 8, %s12
      $region40: #{residual_forward.7} parent=31 // pred_fallthru
        _
    $region32: #{residual_forward.7} parent=5 // pred_fallthru
      _
    %p223 = scmp.le.s32.totalorder 1, %s12
    %p224 = scmp.lt.s32.totalorder %s12, 3
    %p225 = pnand %p223, %p224
    %p226 = pneg %p225
    // Predicated region
    $region41: #{residual_forward.7} parent=5 // pred_check
      _
    $region42: #{residual_forward.7} parent=5 // pred_check_branch
      %228 = sbr.rel (%p225) target = $region44
    $region43: #{residual_forward.7} parent=5 // pred_region
      %s229 = ssub.s32 %s12, 1
      %s230 = smul.u32 8, %s17
      %p231 = scmp.lt.s32.totalorder %s230, 15
      %s232 = scalar_select %p231, %s230, 15
      %s233 = smul.addr %s232, 4
      %s234 = scalar_lea.vmem %s0, %s233
      %p235 = pneg %p38
      %p236 = pneg %p35
      %p237 = pneg %p59
      %p238 = pneg %p56
      %p239 = pneg %p80
      %p240 = pneg %p77
      %p241 = pneg %p101
      %p242 = pneg %p98
      %s243 = smul.u32 8, %s17
      %p244 = scmp.lt.s32.totalorder %s243, 15
      %s245 = scalar_select %p244, %s243, 15
      %s246 = smul.addr %s245, 4
      %s247 = scalar_lea.vmem %s4, %s246
      %p248 = pneg %p127
      %p249 = pneg %p124
      %p250 = pneg %p148
      %p251 = pneg %p145
      %p252 = pneg %p174
      %p253 = pneg %p171
      %s254 = smul.u32 8, %s17
      %p255 = scmp.lt.s32.totalorder %s254, 15
      %s256 = scalar_select %p255, %s254, 15
      %s257 = smul.addr %s256, 8
      %s258 = scalar_lea.vmem %s6, %s257
      %s259 = smul.u32 8, %s17
      %p260 = scmp.lt.s32.totalorder %s259, 15
      %s261 = scalar_select %p260, %s259, 15
      %s262 = smul.addr %s261, 4
      %s263 = scalar_lea.vmem %s0, %s262
      %s264 = smul.u32 8, %s17
      %s265 = smul.u32 8, %s17
      %p266 = scmp.lt.s32.totalorder %s265, 15
      %s267 = scalar_select %p266, %s265, 15
      %s268 = smul.addr %s267, 4
      %s269 = scalar_lea.vmem %s4, %s268
      %s270 = smul.u32 8, %s17
      %s271 = smul.u32 8, %s17
      %p272 = scmp.lt.s32.totalorder %s271, 15
      %s273 = scalar_select %p272, %s271, 15
      %s274 = smul.addr %s273, 8
      %s275 = scalar_lea.vmem %s6, %s274
      %s276 = smul.u32 8, %s17
      %v278 = vld [vmem:[%s3] sm:$0x7]
      %v279 = vld [vmem:[%s1] sm:$0x1]
      %v280 = vld [vmem:[%s1 + $0x1] sm:$0x1]
      %vm281 = vcmask 1040384
      %v282 = vsel %vm281, %v279, 0.0
      %v283 = vsel %vm281, %v280, 0.0
      %v284 = vadd.f32 %v282, %v283
      %v285 = vmul.f32 %v284, 0.0078125
      %v286 = vld [vmem:[%s2] sm:$0x1]
      %v287 = vld [vmem:[%s2 + $0x1] sm:$0x1]
      %v288 = vsel %vm281, %v286, 0.0
      %v289 = vsel %vm281, %v287, 0.0
      %v290 = vadd.f32 %v288, %v289
      %v291 = vmul.f32 %v290, 0.0078125
      %v292 = vmul.f32 %v285, %v285
      %v293 = vsub.f32 %v291, %v292
      %v294 = vadd.f32 %v293, 1e-05
      %v295 = vrsqrt.pop %v294
      %v296 = vmul.f32 %v295, %v278
      %v297 = vmul.f32 %v285, %v296
      %v299 = vrot.slane %v297, 7
      %v301 = vsub.f32 %v278, %v299
      %v302 = vld [vmem:[%s263] sm:$0xf]
      %v303 = vld [vmem:[%s263 + $0x4] sm:$0xf]
      %v304 = vld [vmem:[%s263 + $0x8] sm:$0xf]
      %v305 = vld [vmem:[%s263 + $0xc] sm:$0xf]
      %v306 = vld [vmem:[%s263 + $0x10] sm:$0xf]
      %v307 = vld [vmem:[%s263 + $0x14] sm:$0xf]
      %v308 = vld [vmem:[%s263 + $0x18] sm:$0xf]
      %v309 = vld [vmem:[%s263 + $0x1c] sm:$0xf]
      %v310 = vunpack.c.l.bf16 %v302
      %v311 = vunpack.c.l.bf16 %v303
      %v312 = vunpack.c.l.bf16 %v304
      %v313 = vunpack.c.l.bf16 %v305
      %v314 = vunpack.c.l.bf16 %v306
      %v315 = vunpack.c.l.bf16 %v307
      %v316 = vunpack.c.l.bf16 %v308
      %v317 = vunpack.c.l.bf16 %v309
      %v318 = vld [vmem:[%s269] sm:$0xf]
      %v319 = vld [vmem:[%s269 + $0x4] sm:$0xf]
      %v320 = vld [vmem:[%s269 + $0x8] sm:$0xf]
      %v321 = vld [vmem:[%s269 + $0xc] sm:$0xf]
      %v322 = vld [vmem:[%s269 + $0x10] sm:$0xf]
      %v323 = vld [vmem:[%s269 + $0x14] sm:$0xf]
      %v324 = vld [vmem:[%s269 + $0x18] sm:$0xf]
      %v325 = vld [vmem:[%s269 + $0x1c] sm:$0xf]
      %v326 = vld [vmem:[%s5] sm:$0x3]
      %v335 = vunpack.c.l.b16 %v318
      %v336 = vunpack.c.l.b16 %v319
      %v337 = vunpack.c.l.b16 %v320
      %v338 = vunpack.c.l.b16 %v321
      %v339 = vunpack.c.l.b16 %v322
      %v340 = vunpack.c.l.b16 %v323
      %v341 = vunpack.c.l.b16 %v324
      %v342 = vunpack.c.l.b16 %v325
      %v343 = vpack.c.b16 %v336, %v335
      %v344 = vpack.c.b16 %v338, %v337
      %v345 = vpack.c.b16 %v340, %v339
      %v346 = vpack.c.b16 %v342, %v341
      %vm347 = vcmask 31744
      %v349 = vsel %vm347, %v343, 0
      %v352 = vsel %vm347, %v344, 0
      %v355 = vsel %vm347, %v345, 0
      %v358 = vsel %vm347, %v346, 0
      %vm360 = vcmask 1041408
      %v362 = vsel %vm360, %v326, 0
      %364 = vmatprep.subr.bf16.mxu0 0
      %365 = vmatpush1.bf16.msra.mxu0 %v362
      %366 = vmatprep.subr.bf16.mxu0 0
      %367 = vmatpush1.bf16.msra.mxu0 0
      %368 = vmatprep.subr.bf16.mxu0 0
      %369 = vmatpush1.bf16.msra.mxu0 0
      %370 = vmatprep.subr.bf16.mxu0 0
      %371 = vmatpush1.bf16.msra.mxu0 0
      %372 = vmatprep.subr.bf16.mxu0 0
      %373 = vmatpush1.bf16.msra.mxu0 0
      %374 = vmatprep.subr.bf16.mxu0 0
      %375 = vmatpush1.bf16.msra.mxu0 0
      %376 = vmatprep.subr.bf16.mxu0 0
      %377 = vmatpush1.bf16.msra.mxu0 0
      %378 = vmatprep.subr.bf16.mxu0 0
      %379 = vmatpush1.bf16.msra.mxu0 0
      %380 = vmatprep.subr.bf16.mxu0 0
      %381 = vmatpush1.bf16.msra.mxu0 0
      %382 = vmatprep.subr.bf16.mxu0 0
      %383 = vmatpush1.bf16.msra.mxu0 0
      %384 = vmatprep.subr.bf16.mxu0 0
      %385 = vmatpush1.bf16.msra.mxu0 0
      %386 = vmatprep.subr.bf16.mxu0 0
      %387 = vmatpush1.bf16.msra.mxu0 0
      %388 = vmatprep.subr.bf16.mxu0 0
      %389 = vmatpush1.bf16.msra.mxu0 0
      %390 = vmatprep.subr.bf16.mxu0 0
      %391 = vmatpush1.bf16.msra.mxu0 0
      %392 = vmatprep.subr.bf16.mxu0 0
      %393 = vmatpush1.bf16.msra.mxu0 0
      %394 = vmatprep.subr.bf16.mxu0 0
      %395 = vmatpush1.bf16.msra.mxu0 0
      %396 = vmatprep.mubr.bf16.mxu0 0
      %397 = vmatmul.mubr.bf16.gmra.mrb[0].mxu0 %v349
      %v398 = vpop.f32.mrb[0].mxu0
      %v399 = vadd.f32 0.0, %v398
      %v400 = vpop.f32.mrb[0].mxu0
      %v401 = vpop.f32.mrb[0].mxu0
      %v402 = vadd.f32 0.0, %v401
      %v403 = vpop.f32.mrb[0].mxu0
      %404 = vmatprep.mubr.bf16.mxu0 0
      %405 = vmatmul.mubr.bf16.gmra.mrb[0].mxu0 %v352
      %v406 = vpop.f32.mrb[0].mxu0
      %v407 = vadd.f32 0.0, %v406
      %v408 = vpop.f32.mrb[0].mxu0
      %v409 = vpop.f32.mrb[0].mxu0
      %v410 = vadd.f32 0.0, %v409
      %v411 = vpop.f32.mrb[0].mxu0
      %412 = vmatprep.mubr.bf16.mxu0 0
      %413 = vmatmul.mubr.bf16.gmra.mrb[0].mxu0 %v355
      %v414 = vpop.f32.mrb[0].mxu0
      %v415 = vadd.f32 0.0, %v414
      %v416 = vpop.f32.mrb[0].mxu0
      %v417 = vpop.f32.mrb[0].mxu0
      %v418 = vadd.f32 0.0, %v417
      %v419 = vpop.f32.mrb[0].mxu0
      %420 = vmatprep.mubr.bf16.mxu0 0
      %421 = vmatmul.mubr.bf16.gmra.mrb[0].mxu0 %v358
      %v422 = vpop.f32.mrb[0].mxu0
      %v423 = vadd.f32 0.0, %v422
      %v424 = vpop.f32.mrb[0].mxu0
      %v425 = vpop.f32.mrb[0].mxu0
      %v426 = vadd.f32 0.0, %v425
      %v427 = vpop.f32.mrb[0].mxu0
      %428 = vdwg.mxu0
      %v429 = vlaneseq
      %v430 = vshrl.u32 %v429, 7
      %v431 = vsub.s32 0, %v430
      %v432 = vrot.slane %v296, %v431
      %v433 = vmul.f32 %v310, %v432
      %v434 = vmul.f32 %v311, %v432
      %v435 = vmul.f32 %v312, %v432
      %v436 = vmul.f32 %v313, %v432
      %v437 = vmul.f32 %v314, %v432
      %v438 = vmul.f32 %v315, %v432
      %v439 = vmul.f32 %v316, %v432
      %v440 = vmul.f32 %v317, %v432
      %v441 = vlaneseq
      %v442 = vshrl.u32 %v441, 7
      %v443 = vsub.s32 1, %v442
      %v444 = vrot.slane %v301, %v443
      %v445 = vadd.f32 %v433, %v444
      %v446 = vadd.f32 %v434, %v444
      %v447 = vadd.f32 %v435, %v444
      %v448 = vadd.f32 %v436, %v444
      %v449 = vadd.f32 %v437, %v444
      %v450 = vadd.f32 %v438, %v444
      %v451 = vadd.f32 %v439, %v444
      %v452 = vadd.f32 %v440, %v444
      %v453 = vadd.f32 %v445, %v399
      %v454 = vadd.f32 %v446, %v402
      %v455 = vadd.f32 %v447, %v407
      %v456 = vadd.f32 %v448, %v410
      %v457 = vadd.f32 %v449, %v415
      %v458 = vadd.f32 %v450, %v418
      %v459 = vadd.f32 %v451, %v423
      %v460 = vadd.f32 %v452, %v426
      %v461 = vlaneseq
      %v462 = vshrl.u32 %v461, 7
      %v463 = vsub.s32 2, %v462
      %v464 = vrot.slane %v278, %v463
      %v465 = vadd.f32 %v453, %v464
      %v466 = vadd.f32 %v454, %v464
      %v467 = vadd.f32 %v455, %v464
      %v468 = vadd.f32 %v456, %v464
      %v469 = vadd.f32 %v457, %v464
      %v470 = vadd.f32 %v458, %v464
      %v471 = vadd.f32 %v459, %v464
      %v472 = vadd.f32 %v460, %v464
      %v473 = vmax.f32 %v465, 0.0
      %v474 = vmax.f32 %v466, 0.0
      %v475 = vmax.f32 %v467, 0.0
      %v476 = vmax.f32 %v468, 0.0
      %v477 = vmax.f32 %v469, 0.0
      %v478 = vmax.f32 %v470, 0.0
      %v479 = vmax.f32 %v471, 0.0
      %v480 = vmax.f32 %v472, 0.0
      %481 = vst [vmem:[%s275] sm:$0xff] %v473
      %482 = vst [vmem:[%s275 + $0x8] sm:$0xff] %v474
      %483 = vst [vmem:[%s275 + $0x10] sm:$0xff] %v475
      %484 = vst [vmem:[%s275 + $0x18] sm:$0xff] %v476
      %485 = vst [vmem:[%s275 + $0x20] sm:$0xff] %v477
      %486 = vst [vmem:[%s275 + $0x28] sm:$0xff] %v478
      %487 = vst [vmem:[%s275 + $0x30] sm:$0xff] %v479
      %488 = vst [vmem:[%s275 + $0x38] sm:$0xff] %v480
      %s489 = smul.u32 8, %s17
      %p490 = scmp.lt.s32.totalorder %s489, 15
      %s491 = scalar_select %p490, %s489, 15
      %s492 = smul.addr %s491, 8
      %s493 = scalar_lea.vmem %s6, %s492
      // Predicated region
      $region45: #{residual_forward.7} parent=43 // pred_check
        %p494 = pneg %p171
      $region46: #{residual_forward.7} parent=43 // pred_check_branch
        %496 = sbr.rel (%p494) target = $region48
      $region47: #{residual_forward.7} parent=43 // pred_region
        %s497 = smul.u32 8, %s17
      $region48: #{residual_forward.7} parent=43 // pred_fallthru
        _
    $region44: #{residual_forward.7} parent=5 // pred_fallthru
      _
    %p498 = scmp.le.s32.totalorder 2, %s12
    // Predicated region
    $region49: #{residual_forward.7} parent=5 // pred_check
      %p499 = pneg %p498
    $region50: #{residual_forward.7} parent=5 // pred_check_branch
      %501 = sbr.rel (%p499) target = $region52
    $region51: #{residual_forward.7} parent=5 // pred_region
      %s502 = ssub.s32 %s12, 2
      // Predicated region
      $region53: #{residual_forward.7} parent=51 // pred_check
        %p503 = pneg %p177
      $region54: #{residual_forward.7} parent=51 // pred_check_branch
        %505 = sbr.rel (%p503) target = $region56
      $region55: #{residual_forward.7} parent=51 // pred_region
        %s506 = smul.u32 8, %s18
        %p507 = scmp.lt.s32.totalorder %s506, 15
        %s508 = scalar_select %p507, %s506, 15
        %s509 = smul.addr %s508, 8
        %s510 = scalar_lea.vmem %s6, %s509
      $region56: #{residual_forward.7} parent=51 // pred_fallthru
        _
    $region52: #{residual_forward.7} parent=5 // pred_fallthru
      _
  $region6: #{residual_forward.7} parent=0 // loop_footer
    %s16 = sadd.s32 1, %s12
  $region7: #{residual_forward.7} parent=0 // loop_footer_branch
    %11 = sbr.rel target = $region3
  $region8: #{residual_forward.7} parent=0 // loop_exit
    _

</llo_original>
